<compile_context>
chip_gen: v7x
topology: tpu7x:2x2x1
jax: 0.10.0
libtpu: 0.0.40
codegen_flags: <defaults>
</compile_context>

<pallas_src>
import functools

import jax
import jax.numpy as jnp
from jax.experimental import pallas as pl
from jax.experimental.pallas import tpu as pltpu

WORD_VOCAB = 100
EMBED_DIM = 32       # word_embed_dim
HIDDEN = 32          # model_config.lstm_hidden_size
NUM_CLASSES = 4
SEQ_LEN = 8
BATCH_PAIRS = 32     # number of (left, right) pairs
PAIRS_PER_BLOCK = 8  # pairs processed per grid step


# ---------------------------------------------------------------------------
# Fused kernel (one grid step = one block of PB pairs):
#   LSTM over both sequences of every pair in the block (lefts are rows
#   [0, PB), rights are rows [PB, 2*PB) of the carried state) + linear + argmax.
# LSTM gates are packed PyTorch-style [i, f, g, o] along the 4H lane dimension.
# ---------------------------------------------------------------------------
def _fused_relation_kernel(lx_ref, rx_ref, lstm_ref, out_ref, score_ref, pred_ref,
                           *, hidden, embed, seq_len, pairs):
    H, E, T, PB = hidden, embed, seq_len, pairs
    R = 2 * PB  # rows carried per block: PB lefts then PB rights

    # Unpack the packed parameter slabs with static sublane slices.
    w_ih = lstm_ref[0:E, :].astype(jnp.bfloat16)            # (E, 4H)  bf16 MXU operand
    w_hh = lstm_ref[E:E + H, :].astype(jnp.bfloat16)        # (H, 4H)  bf16 MXU operand
    b = lstm_ref[E + H:E + H + 1, :]                         # (1, 4H)  f32

    # Interleave done in-kernel: lefts on rows [0,PB), rights on rows [PB,2PB).
    x = jnp.concatenate([lx_ref[...], rx_ref[...]], axis=1)  # (T, R, E) f32

    # Hoisted input projection + bias for all timesteps of every sequence in the
    # block: a single (T*R, E) @ (E, 4H) MXU matmul, off the recurrence path.
    gates_x = (jnp.dot(x.reshape(T * R, E).astype(jnp.bfloat16), w_ih,
                       preferred_element_type=jnp.float32) + b)        # (T*R, 4H) f32
    gates_x = gates_x.reshape(T, R, 4 * H)

    # Lane mask selecting the "g" (cell candidate) gate lanes [2H, 3H).
    lane = jax.lax.broadcasted_iota(jnp.int32, (R, 4 * H), 1)
    is_g = (lane >= 2 * H) & (lane < 3 * H)

    h = jnp.zeros((R, H), jnp.float32)
    c = jnp.zeros((R, H), jnp.float32)

    # T is small & static -> fully unrolled recurrence with static slices only.
    for t in range(T):
        gates = gates_x[t] + jnp.dot(h.astype(jnp.bfloat16), w_hh,
                                     preferred_element_type=jnp.float32)  # (R, 4H) f32
        # Full-vreg sigmoid + tanh (2 EUP pushes) + one VPU select.
        act = jnp.where(is_g, jnp.tanh(gates), jax.nn.sigmoid(gates))
        i = act[:, 0 * H:1 * H]
        f = act[:, 1 * H:2 * H]
        g = act[:, 2 * H:3 * H]
        o = act[:, 3 * H:4 * H]
        c = f * c + i * g
        h = o * jnp.tanh(c)

    # Output layer: concat([left_h, right_h]) @ W_out + b_out, fused in-kernel.
    # (concat == left_h @ W_out[:H] + right_h @ W_out[H:])
    h_left = h[:PB, :]
    h_right = h[PB:, :]
    wl = out_ref[0:H, :]
    wr = out_ref[H:2 * H, :]
    bo = out_ref[2 * H:2 * H + 1, :]
    score = (jnp.dot(h_left, wl, preferred_element_type=jnp.float32)
             + jnp.dot(h_right, wr, preferred_element_type=jnp.float32)
             + bo)                                                        # (PB, C)
    score_ref[...] = score

    # argmax with min-index tie-break (matches torch.max / jnp.argmax).
    mx = jnp.max(score, axis=1, keepdims=True)
    idx = jax.lax.broadcasted_iota(jnp.int32, score.shape, 1)
    pred_ref[...] = jnp.min(
        jnp.where(score == mx, idx, jnp.int32(2 ** 31 - 1)), axis=1, keepdims=True)


def relation_classifier_forward(left_emb, right_emb, w_ih, w_hh, b_lstm, w_out, b_out,
                                *, pairs_per_block=PAIRS_PER_BLOCK):
    """left_emb/right_emb: (B, T, E) f32 -> (pred (B,) int32, score (B, C) f32)."""
    B, T, E = left_emb.shape
    H = w_hh.shape[0]
    C = w_out.shape[1]
    PB = pairs_per_block
    assert B % PB == 0, "batch of pairs must be divisible by pairs_per_block"

    # Time-major layout so each timestep of a pair-block is one contiguous
    # (PB, E) sublane slab.
    lx = jnp.transpose(left_emb, (1, 0, 2))                   # (T, B, E)
    rx = jnp.transpose(right_emb, (1, 0, 2))                  # (T, B, E)

    # Pack 7 small parameter arrays into 2 slabs (2 DMAs instead of 7).
    lstm_slab = jnp.concatenate([w_ih, w_hh, b_lstm], axis=0)             # (E+H+1, 4H)
    out_slab = jnp.concatenate([w_out[:H], w_out[H:], b_out], axis=0)     # (2H+1, C)

    kernel = functools.partial(_fused_relation_kernel,
                               hidden=H, embed=E, seq_len=T, pairs=PB)
    score, pred = pl.pallas_call(
        kernel,
        out_shape=(jax.ShapeDtypeStruct((B, C), jnp.float32),
                   jax.ShapeDtypeStruct((B, 1), jnp.int32)),
        grid=(B // PB,),
        in_specs=[
            pl.BlockSpec((T, PB, E), lambda i: (0, i, 0)),       # left  embeddings
            pl.BlockSpec((T, PB, E), lambda i: (0, i, 0)),       # right embeddings
            pl.BlockSpec((E + H + 1, 4 * H), lambda i: (0, 0)),  # LSTM param slab
            pl.BlockSpec((2 * H + 1, C), lambda i: (0, 0)),      # output param slab
        ],
        out_specs=(
            pl.BlockSpec((PB, C), lambda i: (i, 0)),
            pl.BlockSpec((PB, 1), lambda i: (i, 0)),
        ),
        compiler_params=pltpu.CompilerParams(dimension_semantics=("parallel",)),
    )(lx, rx, lstm_slab, out_slab)
    return pred.reshape(B), score


# ---------------------------------------------------------------------------
# Pure-JAX references.  matmul_dtype=bf16 mirrors the kernel's MXU-operand
# numerics exactly; matmul_dtype=f32 is the original full-precision semantics.
# ---------------------------------------------------------------------------
def _ref_forward(left_emb, right_emb, w_ih, w_hh, b, w_out, b_out,
                 matmul_dtype=jnp.float32):
    H = w_hh.shape[0]
    wih = w_ih.astype(matmul_dtype)
    whh = w_hh.astype(matmul_dtype)

    def lstm(x):  # x: (B, T, E)
        Bn, T, _ = x.shape
        h = jnp.zeros((Bn, H), jnp.float32)
        c = jnp.zeros((Bn, H), jnp.float32)
        for t in range(T):
            g = (jnp.dot(x[:, t].astype(matmul_dtype), wih,
                         preferred_element_type=jnp.float32)
                 + jnp.dot(h.astype(matmul_dtype), whh,
                           preferred_element_type=jnp.float32) + b)
            i = jax.nn.sigmoid(g[:, 0 * H:1 * H])
            f = jax.nn.sigmoid(g[:, 1 * H:2 * H])
            gg = jnp.tanh(g[:, 2 * H:3 * H])
            o = jax.nn.sigmoid(g[:, 3 * H:4 * H])
            c = f * c + i * gg
            h = o * jnp.tanh(c)
        return h

    lh = lstm(left_emb)
    rh = lstm(right_emb)
    score = jnp.concatenate([lh, rh], axis=1) @ w_out + b_out
    pred = jnp.argmax(score, axis=1).astype(jnp.int32)
    return pred, score


if __name__ == "__main__":
    key = jax.random.PRNGKey(0)
    ks = jax.random.split(key, 8)
    scale = float(1.0 / (HIDDEN ** 0.5))

    # Deterministic synthetic parameters (shapes per the PyTorch module __init__).
    emb_table = 0.1 * jax.random.normal(ks[0], (WORD_VOCAB, EMBED_DIM), jnp.float32)
    w_ih = jax.random.uniform(ks[1], (EMBED_DIM, 4 * HIDDEN), jnp.float32, -scale, scale)
    w_hh = jax.random.uniform(ks[2], (HIDDEN, 4 * HIDDEN), jnp.float32, -scale, scale)
    b_lstm = jax.random.uniform(ks[3], (1, 4 * HIDDEN), jnp.float32, -scale, scale)
    w_out = jax.random.uniform(ks[4], (2 * HIDDEN, NUM_CLASSES), jnp.float32, -scale, scale)
    b_out = jax.random.uniform(ks[5], (1, NUM_CLASSES), jnp.float32, -scale, scale)

    left_words = jax.random.randint(ks[6], (BATCH_PAIRS, SEQ_LEN), 0, WORD_VOCAB)
    right_words = jax.random.randint(ks[7], (BATCH_PAIRS, SEQ_LEN), 0, WORD_VOCAB)

    # Glue: embedding lookup (plain JAX gather).
    left_emb = emb_table[left_words]     # (B, T, E)
    right_emb = emb_table[right_words]   # (B, T, E)

    # Single fused, batched Pallas kernel: both LSTM recurrences + linear + argmax.
    pred, score = relation_classifier_forward(
        left_emb, right_emb, w_ih, w_hh, b_lstm, w_out, b_out)
    jax.block_until_ready((pred, score))

    # Tight check against a reference that mirrors the kernel's bf16 MXU operands.
    pred_bf, score_bf = _ref_forward(left_emb, right_emb, w_ih, w_hh, b_lstm,
                                     w_out, b_out, matmul_dtype=jnp.bfloat16)
    assert jnp.allclose(score, score_bf, atol=3e-3, rtol=3e-3), "score mismatch (bf16 ref)"
    assert jnp.array_equal(pred, pred_bf), "pred mismatch (bf16 ref)"

    # Loose sanity check against the full-precision (f32 matmul) semantics.
    _, score_f32 = _ref_forward(left_emb, right_emb, w_ih, w_hh, b_lstm,
                                w_out, b_out, matmul_dtype=jnp.float32)
    assert jnp.allclose(score, score_f32, atol=5e-2, rtol=5e-2), "score drift vs f32 ref"

    print("KERNEL_OK")
</pallas_src>

<mosaic_0001>
module attributes {stable_mosaic.version = 11 : i64} {
  func.func @_fused_relation_kernel(%arg0: i32, %arg1: memref<8x8x32xf32, #tpu.memory_space<vmem>>, %arg2: memref<8x8x32xf32, #tpu.memory_space<vmem>>, %arg3: memref<65x128xf32, #tpu.memory_space<vmem>>, %arg4: memref<65x4xf32, #tpu.memory_space<vmem>>, %arg5: memref<8x4xf32, #tpu.memory_space<vmem>>, %arg6: memref<8x1xi32, #tpu.memory_space<vmem>>) attributes {dimension_semantics = [#tpu.dimension_semantics<parallel>], iteration_bounds = array<i64: 4>, scalar_prefetch = 0 : i64, scratch_operands = 0 : i64, tpu.core_type = #tpu.core_type<tc>, window_params = [{transform_indices = @transform_0, window_bounds = array<i64: 8, 8, 32>}, {transform_indices = @transform_1, window_bounds = array<i64: 8, 8, 32>}, {pipeline_mode = #tpu.pipeline_mode<synchronous>, transform_indices = @transform_2, window_bounds = array<i64: 65, 128>}, {pipeline_mode = #tpu.pipeline_mode<synchronous>, transform_indices = @transform_3, window_bounds = array<i64: 65, 4>}, {transform_indices = @transform_4, window_bounds = array<i64: 8, 4>}, {transform_indices = @transform_5, window_bounds = array<i64: 8, 1>}]} {
    %c0 = arith.constant 0 : index
    %c0_0 = arith.constant 0 : index
    %0 = vector.load %arg3[%c0, %c0_0] : memref<65x128xf32, #tpu.memory_space<vmem>>, vector<32x128xf32>
    %1 = arith.truncf %0 : vector<32x128xf32> to vector<32x128xbf16>
    %c32 = arith.constant 32 : index
    %c0_1 = arith.constant 0 : index
    %2 = vector.load %arg3[%c32, %c0_1] : memref<65x128xf32, #tpu.memory_space<vmem>>, vector<32x128xf32>
    %3 = arith.truncf %2 : vector<32x128xf32> to vector<32x128xbf16>
    %c64 = arith.constant 64 : index
    %c0_2 = arith.constant 0 : index
    %4 = vector.load %arg3[%c64, %c0_2] : memref<65x128xf32, #tpu.memory_space<vmem>>, vector<1x128xf32>
    %c0_3 = arith.constant 0 : index
    %c0_4 = arith.constant 0 : index
    %c0_5 = arith.constant 0 : index
    %5 = vector.load %arg1[%c0_3, %c0_4, %c0_5] : memref<8x8x32xf32, #tpu.memory_space<vmem>>, vector<8x8x32xf32>
    %c0_6 = arith.constant 0 : index
    %c0_7 = arith.constant 0 : index
    %c0_8 = arith.constant 0 : index
    %6 = vector.load %arg2[%c0_6, %c0_7, %c0_8] : memref<8x8x32xf32, #tpu.memory_space<vmem>>, vector<8x8x32xf32>
    %7 = tpu.concatenate %5, %6 in 1 : vector<8x8x32xf32>, vector<8x8x32xf32> -> vector<8x16x32xf32>
    %8 = vector.shape_cast %7 : vector<8x16x32xf32> to vector<128x32xf32>
    %9 = arith.truncf %8 : vector<128x32xf32> to vector<128x32xbf16>
    %cst = arith.constant dense<0.000000e+00> : vector<128x128xf32>
    %10 = tpu.matmul %9, %1, %cst {dimension_numbers = #tpu.dot_dimension_numbers<[1], [0], [0], [1], [0, 0, 1, 1], [], []>} : vector<128x32xbf16>, vector<32x128xbf16>, vector<128x128xf32> -> vector<128x128xf32>
    %11 = vector.broadcast %4 : vector<1x128xf32> to vector<128x128xf32>
    %12 = arith.addf %10, %11 : vector<128x128xf32>
    %13 = vector.shape_cast %12 : vector<128x128xf32> to vector<8x16x128xf32>
    %14 = tpu.iota {dimensions = array<i32: 1>} : vector<16x128xi32>
    %c64_i32 = arith.constant 64 : i32
    %15 = vector.broadcast %c64_i32 : i32 to vector<16x128xi32>
    %16 = arith.cmpi sge, %14, %15 : vector<16x128xi32>
    %c96_i32 = arith.constant 96 : i32
    %17 = vector.broadcast %c96_i32 : i32 to vector<16x128xi32>
    %18 = arith.cmpi slt, %14, %17 : vector<16x128xi32>
    %19 = arith.andi %16, %18 : vector<16x128xi1>
    %cst_9 = arith.constant 0.000000e+00 : f32
    %20 = vector.broadcast %cst_9 : f32 to vector<16x32xf32>
    %cst_10 = arith.constant 0.000000e+00 : f32
    %21 = vector.broadcast %cst_10 : f32 to vector<16x32xf32>
    %22 = vector.extract_strided_slice %13 {offsets = [0, 0, 0], sizes = [1, 16, 128], strides = [1, 1, 1]} : vector<8x16x128xf32> to vector<1x16x128xf32>
    %23 = vector.shape_cast %22 : vector<1x16x128xf32> to vector<16x128xf32>
    %24 = arith.truncf %20 : vector<16x32xf32> to vector<16x32xbf16>
    %cst_11 = arith.constant dense<0.000000e+00> : vector<16x128xf32>
    %25 = tpu.matmul %24, %3, %cst_11 {dimension_numbers = #tpu.dot_dimension_numbers<[1], [0], [0], [1], [0, 0, 1, 1], [], []>} : vector<16x32xbf16>, vector<32x128xbf16>, vector<16x128xf32> -> vector<16x128xf32>
    %26 = arith.addf %23, %25 : vector<16x128xf32>
    %27 = math.tanh %26 : vector<16x128xf32>
    %28 = arith.negf %26 : vector<16x128xf32>
    %29 = math.exp %28 : vector<16x128xf32>
    %cst_12 = arith.constant 1.000000e+00 : f32
    %30 = vector.broadcast %cst_12 : f32 to vector<16x128xf32>
    %31 = arith.addf %30, %29 : vector<16x128xf32>
    %32 = arith.divf %30, %31 : vector<16x128xf32>
    %33 = arith.select %19, %27, %32 : vector<16x128xi1>, vector<16x128xf32>
    %34 = vector.extract_strided_slice %33 {offsets = [0, 0], sizes = [16, 32], strides = [1, 1]} : vector<16x128xf32> to vector<16x32xf32>
    %35 = vector.extract_strided_slice %33 {offsets = [0, 32], sizes = [16, 32], strides = [1, 1]} : vector<16x128xf32> to vector<16x32xf32>
    %36 = vector.extract_strided_slice %33 {offsets = [0, 64], sizes = [16, 32], strides = [1, 1]} : vector<16x128xf32> to vector<16x32xf32>
    %37 = vector.extract_strided_slice %33 {offsets = [0, 96], sizes = [16, 32], strides = [1, 1]} : vector<16x128xf32> to vector<16x32xf32>
    %38 = arith.mulf %35, %21 : vector<16x32xf32>
    %39 = arith.mulf %34, %36 : vector<16x32xf32>
    %40 = arith.addf %38, %39 : vector<16x32xf32>
    %41 = math.tanh %40 : vector<16x32xf32>
    %42 = arith.mulf %37, %41 : vector<16x32xf32>
    %43 = vector.extract_strided_slice %13 {offsets = [1, 0, 0], sizes = [1, 16, 128], strides = [1, 1, 1]} : vector<8x16x128xf32> to vector<1x16x128xf32>
    %44 = vector.shape_cast %43 : vector<1x16x128xf32> to vector<16x128xf32>
    %45 = arith.truncf %42 : vector<16x32xf32> to vector<16x32xbf16>
    %cst_13 = arith.constant dense<0.000000e+00> : vector<16x128xf32>
    %46 = tpu.matmul %45, %3, %cst_13 {dimension_numbers = #tpu.dot_dimension_numbers<[1], [0], [0], [1], [0, 0, 1, 1], [], []>} : vector<16x32xbf16>, vector<32x128xbf16>, vector<16x128xf32> -> vector<16x128xf32>
    %47 = arith.addf %44, %46 : vector<16x128xf32>
    %48 = math.tanh %47 : vector<16x128xf32>
    %49 = arith.negf %47 : vector<16x128xf32>
    %50 = math.exp %49 : vector<16x128xf32>
    %cst_14 = arith.constant 1.000000e+00 : f32
    %51 = vector.broadcast %cst_14 : f32 to vector<16x128xf32>
    %52 = arith.addf %51, %50 : vector<16x128xf32>
    %53 = arith.divf %51, %52 : vector<16x128xf32>
    %54 = arith.select %19, %48, %53 : vector<16x128xi1>, vector<16x128xf32>
    %55 = vector.extract_strided_slice %54 {offsets = [0, 0], sizes = [16, 32], strides = [1, 1]} : vector<16x128xf32> to vector<16x32xf32>
    %56 = vector.extract_strided_slice %54 {offsets = [0, 32], sizes = [16, 32], strides = [1, 1]} : vector<16x128xf32> to vector<16x32xf32>
    %57 = vector.extract_strided_slice %54 {offsets = [0, 64], sizes = [16, 32], strides = [1, 1]} : vector<16x128xf32> to vector<16x32xf32>
    %58 = vector.extract_strided_slice %54 {offsets = [0, 96], sizes = [16, 32], strides = [1, 1]} : vector<16x128xf32> to vector<16x32xf32>
    %59 = arith.mulf %56, %40 : vector<16x32xf32>
    %60 = arith.mulf %55, %57 : vector<16x32xf32>
    %61 = arith.addf %59, %60 : vector<16x32xf32>
    %62 = math.tanh %61 : vector<16x32xf32>
    %63 = arith.mulf %58, %62 : vector<16x32xf32>
    %64 = vector.extract_strided_slice %13 {offsets = [2, 0, 0], sizes = [1, 16, 128], strides = [1, 1, 1]} : vector<8x16x128xf32> to vector<1x16x128xf32>
    %65 = vector.shape_cast %64 : vector<1x16x128xf32> to vector<16x128xf32>
    %66 = arith.truncf %63 : vector<16x32xf32> to vector<16x32xbf16>
    %cst_15 = arith.constant dense<0.000000e+00> : vector<16x128xf32>
    %67 = tpu.matmul %66, %3, %cst_15 {dimension_numbers = #tpu.dot_dimension_numbers<[1], [0], [0], [1], [0, 0, 1, 1], [], []>} : vector<16x32xbf16>, vector<32x128xbf16>, vector<16x128xf32> -> vector<16x128xf32>
    %68 = arith.addf %65, %67 : vector<16x128xf32>
    %69 = math.tanh %68 : vector<16x128xf32>
    %70 = arith.negf %68 : vector<16x128xf32>
    %71 = math.exp %70 : vector<16x128xf32>
    %cst_16 = arith.constant 1.000000e+00 : f32
    %72 = vector.broadcast %cst_16 : f32 to vector<16x128xf32>
    %73 = arith.addf %72, %71 : vector<16x128xf32>
    %74 = arith.divf %72, %73 : vector<16x128xf32>
    %75 = arith.select %19, %69, %74 : vector<16x128xi1>, vector<16x128xf32>
    %76 = vector.extract_strided_slice %75 {offsets = [0, 0], sizes = [16, 32], strides = [1, 1]} : vector<16x128xf32> to vector<16x32xf32>
    %77 = vector.extract_strided_slice %75 {offsets = [0, 32], sizes = [16, 32], strides = [1, 1]} : vector<16x128xf32> to vector<16x32xf32>
    %78 = vector.extract_strided_slice %75 {offsets = [0, 64], sizes = [16, 32], strides = [1, 1]} : vector<16x128xf32> to vector<16x32xf32>
    %79 = vector.extract_strided_slice %75 {offsets = [0, 96], sizes = [16, 32], strides = [1, 1]} : vector<16x128xf32> to vector<16x32xf32>
    %80 = arith.mulf %77, %61 : vector<16x32xf32>
    %81 = arith.mulf %76, %78 : vector<16x32xf32>
    %82 = arith.addf %80, %81 : vector<16x32xf32>
    %83 = math.tanh %82 : vector<16x32xf32>
    %84 = arith.mulf %79, %83 : vector<16x32xf32>
    %85 = vector.extract_strided_slice %13 {offsets = [3, 0, 0], sizes = [1, 16, 128], strides = [1, 1, 1]} : vector<8x16x128xf32> to vector<1x16x128xf32>
    %86 = vector.shape_cast %85 : vector<1x16x128xf32> to vector<16x128xf32>
    %87 = arith.truncf %84 : vector<16x32xf32> to vector<16x32xbf16>
    %cst_17 = arith.constant dense<0.000000e+00> : vector<16x128xf32>
    %88 = tpu.matmul %87, %3, %cst_17 {dimension_numbers = #tpu.dot_dimension_numbers<[1], [0], [0], [1], [0, 0, 1, 1], [], []>} : vector<16x32xbf16>, vector<32x128xbf16>, vector<16x128xf32> -> vector<16x128xf32>
    %89 = arith.addf %86, %88 : vector<16x128xf32>
    %90 = math.tanh %89 : vector<16x128xf32>
    %91 = arith.negf %89 : vector<16x128xf32>
    %92 = math.exp %91 : vector<16x128xf32>
    %cst_18 = arith.constant 1.000000e+00 : f32
    %93 = vector.broadcast %cst_18 : f32 to vector<16x128xf32>
    %94 = arith.addf %93, %92 : vector<16x128xf32>
    %95 = arith.divf %93, %94 : vector<16x128xf32>
    %96 = arith.select %19, %90, %95 : vector<16x128xi1>, vector<16x128xf32>
    %97 = vector.extract_strided_slice %96 {offsets = [0, 0], sizes = [16, 32], strides = [1, 1]} : vector<16x128xf32> to vector<16x32xf32>
    %98 = vector.extract_strided_slice %96 {offsets = [0, 32], sizes = [16, 32], strides = [1, 1]} : vector<16x128xf32> to vector<16x32xf32>
    %99 = vector.extract_strided_slice %96 {offsets = [0, 64], sizes = [16, 32], strides = [1, 1]} : vector<16x128xf32> to vector<16x32xf32>
    %100 = vector.extract_strided_slice %96 {offsets = [0, 96], sizes = [16, 32], strides = [1, 1]} : vector<16x128xf32> to vector<16x32xf32>
    %101 = arith.mulf %98, %82 : vector<16x32xf32>
    %102 = arith.mulf %97, %99 : vector<16x32xf32>
    %103 = arith.addf %101, %102 : vector<16x32xf32>
    %104 = math.tanh %103 : vector<16x32xf32>
    %105 = arith.mulf %100, %104 : vector<16x32xf32>
    %106 = vector.extract_strided_slice %13 {offsets = [4, 0, 0], sizes = [1, 16, 128], strides = [1, 1, 1]} : vector<8x16x128xf32> to vector<1x16x128xf32>
    %107 = vector.shape_cast %106 : vector<1x16x128xf32> to vector<16x128xf32>
    %108 = arith.truncf %105 : vector<16x32xf32> to vector<16x32xbf16>
    %cst_19 = arith.constant dense<0.000000e+00> : vector<16x128xf32>
    %109 = tpu.matmul %108, %3, %cst_19 {dimension_numbers = #tpu.dot_dimension_numbers<[1], [0], [0], [1], [0, 0, 1, 1], [], []>} : vector<16x32xbf16>, vector<32x128xbf16>, vector<16x128xf32> -> vector<16x128xf32>
    %110 = arith.addf %107, %109 : vector<16x128xf32>
    %111 = math.tanh %110 : vector<16x128xf32>
    %112 = arith.negf %110 : vector<16x128xf32>
    %113 = math.exp %112 : vector<16x128xf32>
    %cst_20 = arith.constant 1.000000e+00 : f32
    %114 = vector.broadcast %cst_20 : f32 to vector<16x128xf32>
    %115 = arith.addf %114, %113 : vector<16x128xf32>
    %116 = arith.divf %114, %115 : vector<16x128xf32>
    %117 = arith.select %19, %111, %116 : vector<16x128xi1>, vector<16x128xf32>
    %118 = vector.extract_strided_slice %117 {offsets = [0, 0], sizes = [16, 32], strides = [1, 1]} : vector<16x128xf32> to vector<16x32xf32>
    %119 = vector.extract_strided_slice %117 {offsets = [0, 32], sizes = [16, 32], strides = [1, 1]} : vector<16x128xf32> to vector<16x32xf32>
    %120 = vector.extract_strided_slice %117 {offsets = [0, 64], sizes = [16, 32], strides = [1, 1]} : vector<16x128xf32> to vector<16x32xf32>
    %121 = vector.extract_strided_slice %117 {offsets = [0, 96], sizes = [16, 32], strides = [1, 1]} : vector<16x128xf32> to vector<16x32xf32>
    %122 = arith.mulf %119, %103 : vector<16x32xf32>
    %123 = arith.mulf %118, %120 : vector<16x32xf32>
    %124 = arith.addf %122, %123 : vector<16x32xf32>
    %125 = math.tanh %124 : vector<16x32xf32>
    %126 = arith.mulf %121, %125 : vector<16x32xf32>
    %127 = vector.extract_strided_slice %13 {offsets = [5, 0, 0], sizes = [1, 16, 128], strides = [1, 1, 1]} : vector<8x16x128xf32> to vector<1x16x128xf32>
    %128 = vector.shape_cast %127 : vector<1x16x128xf32> to vector<16x128xf32>
    %129 = arith.truncf %126 : vector<16x32xf32> to vector<16x32xbf16>
    %cst_21 = arith.constant dense<0.000000e+00> : vector<16x128xf32>
    %130 = tpu.matmul %129, %3, %cst_21 {dimension_numbers = #tpu.dot_dimension_numbers<[1], [0], [0], [1], [0, 0, 1, 1], [], []>} : vector<16x32xbf16>, vector<32x128xbf16>, vector<16x128xf32> -> vector<16x128xf32>
    %131 = arith.addf %128, %130 : vector<16x128xf32>
    %132 = math.tanh %131 : vector<16x128xf32>
    %133 = arith.negf %131 : vector<16x128xf32>
    %134 = math.exp %133 : vector<16x128xf32>
    %cst_22 = arith.constant 1.000000e+00 : f32
    %135 = vector.broadcast %cst_22 : f32 to vector<16x128xf32>
    %136 = arith.addf %135, %134 : vector<16x128xf32>
    %137 = arith.divf %135, %136 : vector<16x128xf32>
    %138 = arith.select %19, %132, %137 : vector<16x128xi1>, vector<16x128xf32>
    %139 = vector.extract_strided_slice %138 {offsets = [0, 0], sizes = [16, 32], strides = [1, 1]} : vector<16x128xf32> to vector<16x32xf32>
    %140 = vector.extract_strided_slice %138 {offsets = [0, 32], sizes = [16, 32], strides = [1, 1]} : vector<16x128xf32> to vector<16x32xf32>
    %141 = vector.extract_strided_slice %138 {offsets = [0, 64], sizes = [16, 32], strides = [1, 1]} : vector<16x128xf32> to vector<16x32xf32>
    %142 = vector.extract_strided_slice %138 {offsets = [0, 96], sizes = [16, 32], strides = [1, 1]} : vector<16x128xf32> to vector<16x32xf32>
    %143 = arith.mulf %140, %124 : vector<16x32xf32>
    %144 = arith.mulf %139, %141 : vector<16x32xf32>
    %145 = arith.addf %143, %144 : vector<16x32xf32>
    %146 = math.tanh %145 : vector<16x32xf32>
    %147 = arith.mulf %142, %146 : vector<16x32xf32>
    %148 = vector.extract_strided_slice %13 {offsets = [6, 0, 0], sizes = [1, 16, 128], strides = [1, 1, 1]} : vector<8x16x128xf32> to vector<1x16x128xf32>
    %149 = vector.shape_cast %148 : vector<1x16x128xf32> to vector<16x128xf32>
    %150 = arith.truncf %147 : vector<16x32xf32> to vector<16x32xbf16>
    %cst_23 = arith.constant dense<0.000000e+00> : vector<16x128xf32>
    %151 = tpu.matmul %150, %3, %cst_23 {dimension_numbers = #tpu.dot_dimension_numbers<[1], [0], [0], [1], [0, 0, 1, 1], [], []>} : vector<16x32xbf16>, vector<32x128xbf16>, vector<16x128xf32> -> vector<16x128xf32>
    %152 = arith.addf %149, %151 : vector<16x128xf32>
    %153 = math.tanh %152 : vector<16x128xf32>
    %154 = arith.negf %152 : vector<16x128xf32>
    %155 = math.exp %154 : vector<16x128xf32>
    %cst_24 = arith.constant 1.000000e+00 : f32
    %156 = vector.broadcast %cst_24 : f32 to vector<16x128xf32>
    %157 = arith.addf %156, %155 : vector<16x128xf32>
    %158 = arith.divf %156, %157 : vector<16x128xf32>
    %159 = arith.select %19, %153, %158 : vector<16x128xi1>, vector<16x128xf32>
    %160 = vector.extract_strided_slice %159 {offsets = [0, 0], sizes = [16, 32], strides = [1, 1]} : vector<16x128xf32> to vector<16x32xf32>
    %161 = vector.extract_strided_slice %159 {offsets = [0, 32], sizes = [16, 32], strides = [1, 1]} : vector<16x128xf32> to vector<16x32xf32>
    %162 = vector.extract_strided_slice %159 {offsets = [0, 64], sizes = [16, 32], strides = [1, 1]} : vector<16x128xf32> to vector<16x32xf32>
    %163 = vector.extract_strided_slice %159 {offsets = [0, 96], sizes = [16, 32], strides = [1, 1]} : vector<16x128xf32> to vector<16x32xf32>
    %164 = arith.mulf %161, %145 : vector<16x32xf32>
    %165 = arith.mulf %160, %162 : vector<16x32xf32>
    %166 = arith.addf %164, %165 : vector<16x32xf32>
    %167 = math.tanh %166 : vector<16x32xf32>
    %168 = arith.mulf %163, %167 : vector<16x32xf32>
    %169 = vector.extract_strided_slice %13 {offsets = [7, 0, 0], sizes = [1, 16, 128], strides = [1, 1, 1]} : vector<8x16x128xf32> to vector<1x16x128xf32>
    %170 = vector.shape_cast %169 : vector<1x16x128xf32> to vector<16x128xf32>
    %171 = arith.truncf %168 : vector<16x32xf32> to vector<16x32xbf16>
    %cst_25 = arith.constant dense<0.000000e+00> : vector<16x128xf32>
    %172 = tpu.matmul %171, %3, %cst_25 {dimension_numbers = #tpu.dot_dimension_numbers<[1], [0], [0], [1], [0, 0, 1, 1], [], []>} : vector<16x32xbf16>, vector<32x128xbf16>, vector<16x128xf32> -> vector<16x128xf32>
    %173 = arith.addf %170, %172 : vector<16x128xf32>
    %174 = math.tanh %173 : vector<16x128xf32>
    %175 = arith.negf %173 : vector<16x128xf32>
    %176 = math.exp %175 : vector<16x128xf32>
    %cst_26 = arith.constant 1.000000e+00 : f32
    %177 = vector.broadcast %cst_26 : f32 to vector<16x128xf32>
    %178 = arith.addf %177, %176 : vector<16x128xf32>
    %179 = arith.divf %177, %178 : vector<16x128xf32>
    %180 = arith.select %19, %174, %179 : vector<16x128xi1>, vector<16x128xf32>
    %181 = vector.extract_strided_slice %180 {offsets = [0, 0], sizes = [16, 32], strides = [1, 1]} : vector<16x128xf32> to vector<16x32xf32>
    %182 = vector.extract_strided_slice %180 {offsets = [0, 32], sizes = [16, 32], strides = [1, 1]} : vector<16x128xf32> to vector<16x32xf32>
    %183 = vector.extract_strided_slice %180 {offsets = [0, 64], sizes = [16, 32], strides = [1, 1]} : vector<16x128xf32> to vector<16x32xf32>
    %184 = vector.extract_strided_slice %180 {offsets = [0, 96], sizes = [16, 32], strides = [1, 1]} : vector<16x128xf32> to vector<16x32xf32>
    %185 = arith.mulf %182, %166 : vector<16x32xf32>
    %186 = arith.mulf %181, %183 : vector<16x32xf32>
    %187 = arith.addf %185, %186 : vector<16x32xf32>
    %188 = math.tanh %187 : vector<16x32xf32>
    %189 = arith.mulf %184, %188 : vector<16x32xf32>
    %190 = vector.extract_strided_slice %189 {offsets = [0, 0], sizes = [8, 32], strides = [1, 1]} : vector<16x32xf32> to vector<8x32xf32>
    %191 = vector.extract_strided_slice %189 {offsets = [8, 0], sizes = [8, 32], strides = [1, 1]} : vector<16x32xf32> to vector<8x32xf32>
    %c0_27 = arith.constant 0 : index
    %c0_28 = arith.constant 0 : index
    %192 = vector.load %arg4[%c0_27, %c0_28] : memref<65x4xf32, #tpu.memory_space<vmem>>, vector<32x4xf32>
    %c32_29 = arith.constant 32 : index
    %c0_30 = arith.constant 0 : index
    %193 = vector.load %arg4[%c32_29, %c0_30] : memref<65x4xf32, #tpu.memory_space<vmem>>, vector<32x4xf32>
    %c64_31 = arith.constant 64 : index
    %c0_32 = arith.constant 0 : index
    %194 = vector.load %arg4[%c64_31, %c0_32] : memref<65x4xf32, #tpu.memory_space<vmem>>, vector<1x4xf32>
    %cst_33 = arith.constant dense<0.000000e+00> : vector<8x4xf32>
    %195 = tpu.matmul %190, %192, %cst_33 {dimension_numbers = #tpu.dot_dimension_numbers<[1], [0], [0], [1], [0, 0, 1, 1], [], []>} : vector<8x32xf32>, vector<32x4xf32>, vector<8x4xf32> -> vector<8x4xf32>
    %cst_34 = arith.constant dense<0.000000e+00> : vector<8x4xf32>
    %196 = tpu.matmul %191, %193, %cst_34 {dimension_numbers = #tpu.dot_dimension_numbers<[1], [0], [0], [1], [0, 0, 1, 1], [], []>} : vector<8x32xf32>, vector<32x4xf32>, vector<8x4xf32> -> vector<8x4xf32>
    %197 = arith.addf %195, %196 : vector<8x4xf32>
    %198 = vector.broadcast %194 : vector<1x4xf32> to vector<8x4xf32>
    %199 = arith.addf %197, %198 : vector<8x4xf32>
    %c0_35 = arith.constant 0 : index
    %c0_36 = arith.constant 0 : index
    %200 = vector.load %arg5[%c0_35, %c0_36] : memref<8x4xf32, #tpu.memory_space<vmem>>, vector<8x4xf32>
    tpu.vector_store %arg5[%c0_35, %c0_36], %199 {strides = array<i32>} : memref<8x4xf32, #tpu.memory_space<vmem>>, vector<8x4xf32>,
    %cst_37 = arith.constant dense<0xFF800000> : vector<8xf32>
    %201 = vector.multi_reduction <maximumf>, %199, %cst_37 [1] : vector<8x4xf32> to vector<8xf32>
    %202 = vector.shape_cast %201 : vector<8xf32> to vector<8x1xf32>
    %203 = tpu.iota {dimensions = array<i32: 1>} : vector<8x4xi32>
    %204 = vector.broadcast %202 : vector<8x1xf32> to vector<8x4xf32>
    %205 = arith.cmpf oeq, %199, %204 : vector<8x4xf32>
    %c2147483647_i32 = arith.constant 2147483647 : i32
    %206 = vector.broadcast %c2147483647_i32 : i32 to vector<8x4xi32>
    %207 = arith.select %205, %203, %206 : vector<8x4xi1>, vector<8x4xi32>
    %cst_38 = arith.constant dense<2147483647> : vector<8xi32>
    %208 = vector.multi_reduction <minsi>, %207, %cst_38 [1] : vector<8x4xi32> to vector<8xi32>
    %209 = vector.shape_cast %208 : vector<8xi32> to vector<8x1xi32>
    %c0_39 = arith.constant 0 : index
    %c0_40 = arith.constant 0 : index
    %210 = vector.load %arg6[%c0_39, %c0_40] : memref<8x1xi32, #tpu.memory_space<vmem>>, vector<8x1xi32>
    tpu.vector_store %arg6[%c0_39, %c0_40], %209 {strides = array<i32>} : memref<8x1xi32, #tpu.memory_space<vmem>>, vector<8x1xi32>,
    return
  }
  func.func @transform_0(%arg0: i32) -> (i32, i32, i32) {
    %c0_i32 = arith.constant 0 : i32
    %c0_i32_0 = arith.constant 0 : i32
    %c0_i32_1 = arith.constant 0 : i32
    return %c0_i32, %arg0, %c0_i32_0 : i32, i32, i32
  }
  func.func @transform_1(%arg0: i32) -> (i32, i32, i32) {
    %c0_i32 = arith.constant 0 : i32
    %c0_i32_0 = arith.constant 0 : i32
    %c0_i32_1 = arith.constant 0 : i32
    return %c0_i32, %arg0, %c0_i32_0 : i32, i32, i32
  }
  func.func @transform_2(%arg0: i32) -> (i32, i32) {
    %c0_i32 = arith.constant 0 : i32
    %c0_i32_0 = arith.constant 0 : i32
    %c0_i32_1 = arith.constant 0 : i32
    return %c0_i32, %c0_i32_0 : i32, i32
  }
  func.func @transform_3(%arg0: i32) -> (i32, i32) {
    %c0_i32 = arith.constant 0 : i32
    %c0_i32_0 = arith.constant 0 : i32
    %c0_i32_1 = arith.constant 0 : i32
    return %c0_i32, %c0_i32_0 : i32, i32
  }
  func.func @transform_4(%arg0: i32) -> (i32, i32) {
    %c0_i32 = arith.constant 0 : i32
    %c0_i32_0 = arith.constant 0 : i32
    return %arg0, %c0_i32 : i32, i32
  }
  func.func @transform_5(%arg0: i32) -> (i32, i32) {
    %c0_i32 = arith.constant 0 : i32
    %c0_i32_0 = arith.constant 0 : i32
    return %arg0, %c0_i32 : i32, i32
  }
}

</mosaic_0001>

<llo_original>
// kernel: tpu_custom_call.1
$region0: #{tpu_custom_call.1}
  #allocation0 [shape = 'u32[]', space=smem, size = 0x4, offset = 0x4, fixed_abs, tag = 'smem constant byte address 0x4 - core index']
  #allocation1 [shape = 'u32[144,128]{1,0:T(1,128)}', space=vmem, size = 0x12000, scoped, tag = 'internal scratch']
  %s0 = inlined_call_operand.hbm [shape: f32[8,32,32], index: 0, kind: input, shape index: {}]
  %s1 = inlined_call_operand.hbm [shape: f32[8,32,32], index: 1, kind: input, shape index: {}]
  %s2 = inlined_call_operand.vmem [shape: f32[65,128], index: 2, kind: input, shape index: {}]
  %s3 = inlined_call_operand.vmem [shape: f32[65,4], index: 3, kind: input, shape index: {}]
  %s4 = inlined_call_operand.vmem [shape: f32[32,4], index: 4, kind: output, shape index: {0}]
  %s5 = inlined_call_operand.vmem [shape: s32[32,1], index: 5, kind: output, shape index: {1}]
  %6 = xla_tuple %s4, %s5
  %s7 = sld [smem:[#allocation0]]
  $region65: #{tpu_custom_call.1} parent=0
    _
  %s9 = ssub.s32 1, %s7
  %s10 = scalar_select 0, %s9, %s7
  $region1: #{tpu_custom_call.1} parent=0
    #allocation2 [shape = 'u8[65536]{0}', space=vmem, size = 0x10000, scoped, tag = 'input window, operand 0']
    #allocation3 [shape = 's32[2]{0}', space=sflag, size = 0x8, scoped, tag = 'scoped memory for tpu_custom_call.1']
    #allocation4 [shape = 'u8[65536]{0}', space=vmem, size = 0x10000, scoped, tag = 'input window, operand 1']
    #allocation5 [shape = 's32[2]{0}', space=sflag, size = 0x8, scoped, tag = 'scoped memory for tpu_custom_call.1']
    %11 = vsyncpa [#allocation3], 0
    %s12 = scalar_lea.sflag [#allocation3], 1
    %13 = vsyncpa %s12, 0
    %14 = vsyncpa [#allocation5], 0
    %s15 = scalar_lea.sflag [#allocation5], 1
    %16 = vsyncpa %s15, 0
    loop: start=0, step=1, limit=6
    $region2: #{tpu_custom_call.1} parent=1 // loop_pre_header
      _
    $region3: #{tpu_custom_call.1} parent=1 // loop_header
      %s18 = sphi 0, %s22
      %p19 = scmp.ge.s32.totalorder %s18, 6
      %s28 = sphi 0, %s30
      %s31 = sphi 0, %s28
      %s32 = sphi 0, %s31
      %s48 = sphi 0, %s32
      %s54 = sphi 0, %s56
      %s57 = sphi 0, %s54
      %s58 = sphi 0, %s57
      %s74 = sphi 0, %s58
      %s78 = sphi 0, %s78
      %s80 = sphi 0, %s78
      %s81 = sphi 0, %s80
      %s95 = sphi 0, %s81
      %s99 = sphi 0, %s99
      %s101 = sphi 0, %s99
      %s102 = sphi 0, %s101
      %s116 = sphi 0, %s102
      %s122 = sphi 0, %s124
      %s125 = sphi 0, %s122
      %s126 = sphi 0, %s125
      %s142 = sphi 0, %s126
      %s148 = sphi 0, %s150
      %s151 = sphi 0, %s148
      %s152 = sphi 0, %s151
      %s168 = sphi 0, %s152
    $region4: #{tpu_custom_call.1} parent=1 // loop_header_branch
      %21 = sbr.rel (%p19) target = $region8
    $region5: #{tpu_custom_call.1} parent=1 // loop_body
      %s23 = ssub.s32 %s18, 1
      %s24 = ssub.s32 %s18, 2
      %s25 = sadd.s32 %s18, 1
      %s26 = ssub.s32 %s18, %s25
      %p27 = scmp.eq.s32.totalorder %s26, 0
      %s29 = sadd.s32 %s28, 1
      %s30 = scalar_select %p27, %s28, %s29
      %p33 = pneg %p27
      %p34 = scmp.eq.s32.totalorder %s18, 3
      %p35 = por %p33, %p34
      %p36 = scmp.ne.s32.totalorder %s28, %s31
      %p37 = scmp.eq.s32.totalorder %s18, 0
      %p38 = por %p36, %p37
      %p39 = scmp.ne.s32.totalorder %s28, %s31
      %p40 = scmp.eq.s32.totalorder %s23, 3
      %p41 = por %p39, %p40
      %p42 = scmp.ne.s32.totalorder %s31, %s32
      %p43 = scmp.eq.s32.totalorder %s23, 0
      %p44 = por %p42, %p43
      %p45 = scmp.ne.s32.totalorder %s31, %s32
      %p46 = scmp.eq.s32.totalorder %s24, 3
      %p47 = por %p45, %p46
      %p49 = scmp.ne.s32.totalorder %s32, %s48
      %p50 = scmp.eq.s32.totalorder %s24, 0
      %p51 = por %p49, %p50
      %s52 = ssub.s32 %s18, %s25
      %p53 = scmp.eq.s32.totalorder %s52, 0
      %s55 = sadd.s32 %s54, 1
      %s56 = scalar_select %p53, %s54, %s55
      %p59 = pneg %p53
      %p60 = scmp.eq.s32.totalorder %s18, 3
      %p61 = por %p59, %p60
      %p62 = scmp.ne.s32.totalorder %s54, %s57
      %p63 = scmp.eq.s32.totalorder %s18, 0
      %p64 = por %p62, %p63
      %p65 = scmp.ne.s32.totalorder %s54, %s57
      %p66 = scmp.eq.s32.totalorder %s23, 3
      %p67 = por %p65, %p66
      %p68 = scmp.ne.s32.totalorder %s57, %s58
      %p69 = scmp.eq.s32.totalorder %s23, 0
      %p70 = por %p68, %p69
      %p71 = scmp.ne.s32.totalorder %s57, %s58
      %p72 = scmp.eq.s32.totalorder %s24, 3
      %p73 = por %p71, %p72
      %p75 = scmp.ne.s32.totalorder %s58, %s74
      %p76 = scmp.eq.s32.totalorder %s24, 0
      %p77 = por %p75, %p76
      %s79 = sadd.s32 %s78, 1
      %p82 = scmp.eq.s32.totalorder %s18, 3
      %p83 = scmp.ne.s32.totalorder %s78, %s80
      %p84 = scmp.eq.s32.totalorder %s18, 0
      %p85 = por %p83, %p84
      %p86 = scmp.ne.s32.totalorder %s78, %s80
      %p87 = scmp.eq.s32.totalorder %s23, 3
      %p88 = por %p86, %p87
      %p89 = scmp.ne.s32.totalorder %s80, %s81
      %p90 = scmp.eq.s32.totalorder %s23, 0
      %p91 = por %p89, %p90
      %p92 = scmp.ne.s32.totalorder %s80, %s81
      %p93 = scmp.eq.s32.totalorder %s24, 3
      %p94 = por %p92, %p93
      %p96 = scmp.ne.s32.totalorder %s81, %s95
      %p97 = scmp.eq.s32.totalorder %s24, 0
      %p98 = por %p96, %p97
      %s100 = sadd.s32 %s99, 1
      %p103 = scmp.eq.s32.totalorder %s18, 3
      %p104 = scmp.ne.s32.totalorder %s99, %s101
      %p105 = scmp.eq.s32.totalorder %s18, 0
      %p106 = por %p104, %p105
      %p107 = scmp.ne.s32.totalorder %s99, %s101
      %p108 = scmp.eq.s32.totalorder %s23, 3
      %p109 = por %p107, %p108
      %p110 = scmp.ne.s32.totalorder %s101, %s102
      %p111 = scmp.eq.s32.totalorder %s23, 0
      %p112 = por %p110, %p111
      %p113 = scmp.ne.s32.totalorder %s101, %s102
      %p114 = scmp.eq.s32.totalorder %s24, 3
      %p115 = por %p113, %p114
      %p117 = scmp.ne.s32.totalorder %s102, %s116
      %p118 = scmp.eq.s32.totalorder %s24, 0
      %p119 = por %p117, %p118
      %s120 = ssub.s32 %s18, %s25
      %p121 = scmp.eq.s32.totalorder %s120, 0
      %s123 = sadd.s32 %s122, 1
      %s124 = scalar_select %p121, %s122, %s123
      %p127 = pneg %p121
      %p128 = scmp.eq.s32.totalorder %s18, 3
      %p129 = por %p127, %p128
      %p130 = scmp.ne.s32.totalorder %s122, %s125
      %p131 = scmp.eq.s32.totalorder %s18, 0
      %p132 = por %p130, %p131
      %p133 = scmp.ne.s32.totalorder %s122, %s125
      %p134 = scmp.eq.s32.totalorder %s23, 3
      %p135 = por %p133, %p134
      %p136 = scmp.ne.s32.totalorder %s125, %s126
      %p137 = scmp.eq.s32.totalorder %s23, 0
      %p138 = por %p136, %p137
      %p139 = scmp.ne.s32.totalorder %s125, %s126
      %p140 = scmp.eq.s32.totalorder %s24, 3
      %p141 = por %p139, %p140
      %p143 = scmp.ne.s32.totalorder %s126, %s142
      %p144 = scmp.eq.s32.totalorder %s24, 0
      %p145 = por %p143, %p144
      %s146 = ssub.s32 %s18, %s25
      %p147 = scmp.eq.s32.totalorder %s146, 0
      %s149 = sadd.s32 %s148, 1
      %s150 = scalar_select %p147, %s148, %s149
      %p153 = pneg %p147
      %p154 = scmp.eq.s32.totalorder %s18, 3
      %p155 = por %p153, %p154
      %p156 = scmp.ne.s32.totalorder %s148, %s151
      %p157 = scmp.eq.s32.totalorder %s18, 0
      %p158 = por %p156, %p157
      %p159 = scmp.ne.s32.totalorder %s148, %s151
      %p160 = scmp.eq.s32.totalorder %s23, 3
      %p161 = por %p159, %p160
      %p162 = scmp.ne.s32.totalorder %s151, %s152
      %p163 = scmp.eq.s32.totalorder %s23, 0
      %p164 = por %p162, %p163
      %p165 = scmp.ne.s32.totalorder %s151, %s152
      %p166 = scmp.eq.s32.totalorder %s24, 3
      %p167 = por %p165, %p166
      %p169 = scmp.ne.s32.totalorder %s152, %s168
      %p170 = scmp.eq.s32.totalorder %s24, 0
      %p171 = por %p169, %p170
      %p172 = scmp.le.s32.totalorder 1, %s18
      %p173 = scmp.lt.s32.totalorder %s18, 5
      %p174 = pnand %p172, %p173
      %p175 = pneg %p174
      // Predicated region
      $region9: #{tpu_custom_call.1} parent=5 // pred_check
        _
      $region10: #{tpu_custom_call.1} parent=5 // pred_check_branch
        %177 = sbr.rel (%p174) target = $region12
      $region11: #{tpu_custom_call.1} parent=5 // pred_region
        %s178 = ssub.s32 %s18, 1
        // Predicated region
        $region13: #{tpu_custom_call.1} parent=11 // pred_check
          %p179 = pneg %p91
        $region14: #{tpu_custom_call.1} parent=11 // pred_check_branch
          %181 = sbr.rel (%p179) target = $region16
        $region15: #{tpu_custom_call.1} parent=11 // pred_region
          _
        $region16: #{tpu_custom_call.1} parent=11 // pred_fallthru
          _
        // Predicated region
        $region17: #{tpu_custom_call.1} parent=11 // pred_check
          %p182 = pneg %p112
        $region18: #{tpu_custom_call.1} parent=11 // pred_check_branch
          %184 = sbr.rel (%p182) target = $region20
        $region19: #{tpu_custom_call.1} parent=11 // pred_region
          _
        $region20: #{tpu_custom_call.1} parent=11 // pred_fallthru
          _
      $region12: #{tpu_custom_call.1} parent=5 // pred_fallthru
        _
      %p185 = scmp.lt.s32.totalorder %s18, 4
      // Predicated region
      $region21: #{tpu_custom_call.1} parent=5 // pred_check
        %p186 = pneg %p185
      $region22: #{tpu_custom_call.1} parent=5 // pred_check_branch
        %188 = sbr.rel (%p186) target = $region24
      $region23: #{tpu_custom_call.1} parent=5 // pred_region
        // Predicated region
        $region25: #{tpu_custom_call.1} parent=23 // pred_check
          %p189 = pneg %p38
        $region26: #{tpu_custom_call.1} parent=23 // pred_check_branch
          %191 = sbr.rel (%p189) target = $region28
        $region27: #{tpu_custom_call.1} parent=23 // pred_region
          %s192 = sand.u32 %s28, 1
          %s193 = scalar_lea.sflag [#allocation3], %s192
          %s194 = sand.u32 %s28, 1
          %s195 = smul.addr %s194, 64
          %s196 = scalar_lea.vmem [#allocation2], %s195
          %s198 = ssub.s32 1024, 1024
          %199 = vsyncadd %s193, %s198
          %s200 = smul.addr %s18, 128
          %s201 = scalar_lea.hbm %s0, %s200
          %s202 = sshll.u32 %s196, 4
          %s203 = int_to_ptr.vmem [resolvable:$true] %s202
          %208 = dma.hbm_to_vmem [thread:$0]  %s201, 1024, %s203, %s193, 512, 128, 8
        $region28: #{tpu_custom_call.1} parent=23 // pred_fallthru
          _
        // Predicated region
        $region29: #{tpu_custom_call.1} parent=23 // pred_check
          %p209 = pneg %p64
        $region30: #{tpu_custom_call.1} parent=23 // pred_check_branch
          %211 = sbr.rel (%p209) target = $region32
        $region31: #{tpu_custom_call.1} parent=23 // pred_region
          %s212 = sand.u32 %s54, 1
          %s213 = scalar_lea.sflag [#allocation5], %s212
          %s214 = sand.u32 %s54, 1
          %s215 = smul.addr %s214, 64
          %s216 = scalar_lea.vmem [#allocation4], %s215
          %s218 = ssub.s32 1024, 1024
          %219 = vsyncadd %s213, %s218
          %s220 = smul.addr %s18, 128
          %s221 = scalar_lea.hbm %s1, %s220
          %s222 = sshll.u32 %s216, 4
          %s223 = int_to_ptr.vmem [resolvable:$true] %s222
          %228 = dma.hbm_to_vmem [thread:$0]  %s221, 1024, %s223, %s213, 512, 128, 8
        $region32: #{tpu_custom_call.1} parent=23 // pred_fallthru
          _
      $region24: #{tpu_custom_call.1} parent=5 // pred_fallthru
        _
      %p229 = scmp.le.s32.totalorder 1, %s18
      %p230 = scmp.lt.s32.totalorder %s18, 5
      %p231 = pnand %p229, %p230
      %p232 = pneg %p231
      // Predicated region
      $region33: #{tpu_custom_call.1} parent=5 // pred_check
        _
      $region34: #{tpu_custom_call.1} parent=5 // pred_check_branch
        %234 = sbr.rel (%p231) target = $region36
      $region35: #{tpu_custom_call.1} parent=5 // pred_region
        %s235 = ssub.s32 %s18, 1
        %s236 = sand.u32 %s31, 1
        %s237 = scalar_lea.sflag [#allocation3], %s236
        %s238 = sand.u32 %s31, 1
        %s239 = smul.addr %s238, 64
        %s240 = scalar_lea.vmem [#allocation2], %s239
        // Predicated region
        $region37: #{tpu_custom_call.1} parent=35 // pred_check
          %p241 = pneg %p44
        $region38: #{tpu_custom_call.1} parent=35 // pred_check_branch
          %243 = sbr.rel (%p241) target = $region40
        $region39: #{tpu_custom_call.1} parent=35 // pred_region
          %244 = dma.done %s237, 1024
        $region40: #{tpu_custom_call.1} parent=35 // pred_fallthru
          _
        %s245 = sand.u32 %s57, 1
        %s246 = scalar_lea.sflag [#allocation5], %s245
        %s247 = sand.u32 %s57, 1
        %s248 = smul.addr %s247, 64
        %s249 = scalar_lea.vmem [#allocation4], %s248
        // Predicated region
        $region41: #{tpu_custom_call.1} parent=35 // pred_check
          %p250 = pneg %p70
        $region42: #{tpu_custom_call.1} parent=35 // pred_check_branch
          %252 = sbr.rel (%p250) target = $region44
        $region43: #{tpu_custom_call.1} parent=35 // pred_region
          %253 = dma.done %s246, 1024
        $region44: #{tpu_custom_call.1} parent=35 // pred_fallthru
          _
        %s254 = sand.u32 %s31, 1
        %s255 = scalar_lea.sflag [#allocation3], %s254
        %s256 = sand.u32 %s31, 1
        %s257 = smul.addr %s256, 64
        %s258 = scalar_lea.vmem [#allocation2], %s257
        %p259 = pneg %p44
        %p260 = pneg %p41
        %s261 = sand.u32 %s57, 1
        %s262 = scalar_lea.sflag [#allocation5], %s261
        %s263 = sand.u32 %s57, 1
        %s264 = smul.addr %s263, 64
        %s265 = scalar_lea.vmem [#allocation4], %s264
        %p266 = pneg %p70
        %p267 = pneg %p67
        %p268 = pneg %p91
        %p269 = pneg %p88
        %p270 = pneg %p112
        %p271 = pneg %p109
        %p272 = pneg %p138
        %p273 = pneg %p135
        %p274 = scmp.lt.s32.totalorder %s23, 3
        %s275 = scalar_select %p274, %s23, 3
        %s276 = smul.addr %s275, 8
        %s277 = scalar_lea.vmem %s4, %s276
        %p278 = pneg %p164
        %p279 = pneg %p161
        %p280 = scmp.lt.s32.totalorder %s23, 3
        %s281 = scalar_select %p280, %s23, 3
        %s282 = smul.addr %s281, 8
        %s283 = scalar_lea.vmem %s5, %s282
        %p284 = scmp.lt.s32.totalorder %s23, 3
        %s285 = scalar_select %p284, %s23, 3
        %s286 = smul.addr %s285, 8
        %s287 = scalar_lea.vmem %s4, %s286
        %p288 = scmp.lt.s32.totalorder %s23, 3
        %s289 = scalar_select %p288, %s23, 3
        %s290 = smul.addr %s289, 8
        %s291 = scalar_lea.vmem %s5, %s290
        %v293 = vld [vmem:[%s2] sm:$0xff]
        %v294 = vld [vmem:[%s2 + $0x8] sm:$0xff]
        %v295 = vld [vmem:[%s2 + $0x10] sm:$0xff]
        %v296 = vld [vmem:[%s2 + $0x18] sm:$0xff]
        %v297 = vpack.c.bf16 %v294, %v293
        %v298 = vpack.c.bf16 %v296, %v295
        %v299 = vld [vmem:[%s2 + $0x20] sm:$0xff]
        %v300 = vld [vmem:[%s2 + $0x28] sm:$0xff]
        %v301 = vld [vmem:[%s2 + $0x30] sm:$0xff]
        %v302 = vld [vmem:[%s2 + $0x38] sm:$0xff]
        %v303 = vpack.c.bf16 %v300, %v299
        %v304 = vpack.c.bf16 %v302, %v301
        %v305 = vld [vmem:[%s2 + $0x40] sm:$0x1]
        %v306 = vld [vmem:[%s240] sm:$0xff]
        %v307 = vld [vmem:[%s240 + $0x8] sm:$0xff]
        %v308 = vld [vmem:[%s240 + $0x10] sm:$0xff]
        %v309 = vld [vmem:[%s240 + $0x18] sm:$0xff]
        %v310 = vld [vmem:[%s240 + $0x20] sm:$0xff]
        %v311 = vld [vmem:[%s240 + $0x28] sm:$0xff]
        %v312 = vld [vmem:[%s240 + $0x30] sm:$0xff]
        %v313 = vld [vmem:[%s240 + $0x38] sm:$0xff]
        %v314 = vld [vmem:[%s249] sm:$0xff]
        %v315 = vld [vmem:[%s249 + $0x8] sm:$0xff]
        %v316 = vld [vmem:[%s249 + $0x10] sm:$0xff]
        %v317 = vld [vmem:[%s249 + $0x18] sm:$0xff]
        %v318 = vld [vmem:[%s249 + $0x20] sm:$0xff]
        %v319 = vld [vmem:[%s249 + $0x28] sm:$0xff]
        %v320 = vld [vmem:[%s249 + $0x30] sm:$0xff]
        %v321 = vld [vmem:[%s249 + $0x38] sm:$0xff]
        %v322 = vpack.c.bf16 %v314, %v306
        %v323 = vpack.c.bf16 %v315, %v307
        %v324 = vpack.c.bf16 %v316, %v308
        %v325 = vpack.c.bf16 %v317, %v309
        %v326 = vpack.c.bf16 %v318, %v310
        %v327 = vpack.c.bf16 %v319, %v311
        %v328 = vpack.c.bf16 %v320, %v312
        %v329 = vpack.c.bf16 %v321, %v313
        %v330 = vlaneseq
        %v331 = vshrl.u32 %v330, 7
        %v332 = vsub.s32 0, %v331
        %v333 = vrot.slane %v305, %v332
        %vm334 = vcmask 261120
        %v336 = vsel %vm334, %v322, 0
        %v339 = vsel %vm334, %v323, 0
        %v342 = vsel %vm334, %v324, 0
        %v345 = vsel %vm334, %v325, 0
        %v348 = vsel %vm334, %v326, 0
        %v351 = vsel %vm334, %v327, 0
        %v354 = vsel %vm334, %v328, 0
        %v357 = vsel %vm334, %v329, 0
        %359 = vmatprep.subr.bf16.mxu0 0
        %360 = vmatpush1.bf16.msra.mxu0 %v297
        %361 = vmatprep.subr.bf16.mxu0 0
        %362 = vmatpush1.bf16.msra.mxu0 %v298
        %363 = vmatprep.subr.bf16.mxu0 0
        %364 = vmatpush1.bf16.msra.mxu0 0
        %365 = vmatprep.subr.bf16.mxu0 0
        %366 = vmatpush1.bf16.msra.mxu0 0
        %367 = vmatprep.subr.bf16.mxu0 0
        %368 = vmatpush1.bf16.msra.mxu0 0
        %369 = vmatprep.subr.bf16.mxu0 0
        %370 = vmatpush1.bf16.msra.mxu0 0
        %371 = vmatprep.subr.bf16.mxu0 0
        %372 = vmatpush1.bf16.msra.mxu0 0
        %373 = vmatprep.subr.bf16.mxu0 0
        %374 = vmatpush1.bf16.msra.mxu0 0
        %375 = vmatprep.subr.bf16.mxu0 0
        %376 = vmatpush1.bf16.msra.mxu0 0
        %377 = vmatprep.subr.bf16.mxu0 0
        %378 = vmatpush1.bf16.msra.mxu0 0
        %379 = vmatprep.subr.bf16.mxu0 0
        %380 = vmatpush1.bf16.msra.mxu0 0
        %381 = vmatprep.subr.bf16.mxu0 0
        %382 = vmatpush1.bf16.msra.mxu0 0
        %383 = vmatprep.subr.bf16.mxu0 0
        %384 = vmatpush1.bf16.msra.mxu0 0
        %385 = vmatprep.subr.bf16.mxu0 0
        %386 = vmatpush1.bf16.msra.mxu0 0
        %387 = vmatprep.subr.bf16.mxu0 0
        %388 = vmatpush1.bf16.msra.mxu0 0
        %389 = vmatprep.subr.bf16.mxu0 0
        %390 = vmatpush1.bf16.msra.mxu0 0
        %391 = vmatprep.mubr.bf16.mxu0 0
        %392 = vmatmul.mubr.bf16.gmra.mrb[0].mxu0 %v336
        %v393 = vpop.f32.mrb[0].mxu0
        %v394 = vadd.f32 %v333, %v393
        %v395 = vpop.f32.mrb[0].mxu0
        %v396 = vpop.f32.mrb[0].mxu0
        %v397 = vadd.f32 %v333, %v396
        %v398 = vpop.f32.mrb[0].mxu0
        %399 = vmatprep.mubr.bf16.mxu0 0
        %400 = vmatmul.mubr.bf16.gmra.mrb[0].mxu0 %v339
        %v401 = vpop.f32.mrb[0].mxu0
        %v402 = vadd.f32 %v333, %v401
        %v403 = vpop.f32.mrb[0].mxu0
        %v404 = vpop.f32.mrb[0].mxu0
        %v405 = vadd.f32 %v333, %v404
        %v406 = vpop.f32.mrb[0].mxu0
        %407 = vmatprep.mubr.bf16.mxu0 0
        %408 = vmatmul.mubr.bf16.gmra.mrb[0].mxu0 %v342
        %v409 = vpop.f32.mrb[0].mxu0
        %v410 = vadd.f32 %v333, %v409
        %v411 = vpop.f32.mrb[0].mxu0
        %v412 = vpop.f32.mrb[0].mxu0
        %v413 = vadd.f32 %v333, %v412
        %v414 = vpop.f32.mrb[0].mxu0
        %415 = vmatprep.mubr.bf16.mxu0 0
        %416 = vmatmul.mubr.bf16.gmra.mrb[0].mxu0 %v345
        %v417 = vpop.f32.mrb[0].mxu0
        %v418 = vadd.f32 %v333, %v417
        %v419 = vpop.f32.mrb[0].mxu0
        %v420 = vpop.f32.mrb[0].mxu0
        %v421 = vadd.f32 %v333, %v420
        %v422 = vpop.f32.mrb[0].mxu0
        %423 = vmatprep.mubr.bf16.mxu0 0
        %424 = vmatmul.mubr.bf16.gmra.mrb[0].mxu0 %v348
        %v425 = vpop.f32.mrb[0].mxu0
        %v426 = vadd.f32 %v333, %v425
        %v427 = vpop.f32.mrb[0].mxu0
        %v428 = vpop.f32.mrb[0].mxu0
        %v429 = vadd.f32 %v333, %v428
        %v430 = vpop.f32.mrb[0].mxu0
        %431 = vmatprep.mubr.bf16.mxu0 0
        %432 = vmatmul.mubr.bf16.gmra.mrb[0].mxu0 %v351
        %v433 = vpop.f32.mrb[0].mxu0
        %v434 = vadd.f32 %v333, %v433
        %v435 = vpop.f32.mrb[0].mxu0
        %v436 = vpop.f32.mrb[0].mxu0
        %v437 = vadd.f32 %v333, %v436
        %v438 = vpop.f32.mrb[0].mxu0
        %439 = vmatprep.mubr.bf16.mxu0 0
        %440 = vmatmul.mubr.bf16.gmra.mrb[0].mxu0 %v354
        %v441 = vpop.f32.mrb[0].mxu0
        %v442 = vadd.f32 %v333, %v441
        %v443 = vpop.f32.mrb[0].mxu0
        %v444 = vpop.f32.mrb[0].mxu0
        %v445 = vadd.f32 %v333, %v444
        %v446 = vpop.f32.mrb[0].mxu0
        %447 = vmatprep.mubr.bf16.mxu0 0
        %448 = vmatmul.mubr.bf16.gmra.mrb[0].mxu0 %v357
        %v449 = vpop.f32.mrb[0].mxu0
        %v450 = vadd.f32 %v333, %v449
        %v451 = vpop.f32.mrb[0].mxu0
        %v452 = vpop.f32.mrb[0].mxu0
        %v453 = vadd.f32 %v333, %v452
        %v454 = vpop.f32.mrb[0].mxu0
        %455 = vdwg.mxu0
        %v456 = vlaneseq
        %v457 = vand.u32 %v456, 127
        %vm458 = vcmp.ge.s32.totalorder %v457, 64
        %vm459 = vcmp.lt.s32.totalorder %v457, 96
        %vm460 = vmand %vm458, %vm459
        %v462 = vsel %vm334, 0, 0
        %464 = vmatprep.subr.bf16.mxu0 0
        %465 = vmatpush1.bf16.msra.mxu0 %v303
        %466 = vmatprep.subr.bf16.mxu0 0
        %467 = vmatpush1.bf16.msra.mxu0 %v304
        %468 = vmatprep.subr.bf16.mxu0 0
        %469 = vmatpush1.bf16.msra.mxu0 0
        %470 = vmatprep.subr.bf16.mxu0 0
        %471 = vmatpush1.bf16.msra.mxu0 0
        %472 = vmatprep.subr.bf16.mxu0 0
        %473 = vmatpush1.bf16.msra.mxu0 0
        %474 = vmatprep.subr.bf16.mxu0 0
        %475 = vmatpush1.bf16.msra.mxu0 0
        %476 = vmatprep.subr.bf16.mxu0 0
        %477 = vmatpush1.bf16.msra.mxu0 0
        %478 = vmatprep.subr.bf16.mxu0 0
        %479 = vmatpush1.bf16.msra.mxu0 0
        %480 = vmatprep.subr.bf16.mxu0 0
        %481 = vmatpush1.bf16.msra.mxu0 0
        %482 = vmatprep.subr.bf16.mxu0 0
        %483 = vmatpush1.bf16.msra.mxu0 0
        %484 = vmatprep.subr.bf16.mxu0 0
        %485 = vmatpush1.bf16.msra.mxu0 0
        %486 = vmatprep.subr.bf16.mxu0 0
        %487 = vmatpush1.bf16.msra.mxu0 0
        %488 = vmatprep.subr.bf16.mxu0 0
        %489 = vmatpush1.bf16.msra.mxu0 0
        %490 = vmatprep.subr.bf16.mxu0 0
        %491 = vmatpush1.bf16.msra.mxu0 0
        %492 = vmatprep.subr.bf16.mxu0 0
        %493 = vmatpush1.bf16.msra.mxu0 0
        %494 = vmatprep.subr.bf16.mxu0 0
        %495 = vmatpush1.bf16.msra.mxu0 0
        %496 = vmatprep.mubr.bf16.mxu0 0
        %497 = vmatmul.mubr.bf16.gmra.mrb[0].mxu0 %v462
        %v498 = vpop.f32.mrb[0].mxu0
        %v499 = vadd.f32 0.0, %v498
        %v500 = vpop.f32.mrb[0].mxu0
        %v501 = vpop.f32.mrb[0].mxu0
        %v502 = vadd.f32 0.0, %v501
        %v503 = vpop.f32.mrb[0].mxu0
        %504 = vdwg.mxu0
        %v505 = vadd.f32 %v394, %v499
        %v506 = vadd.f32 %v397, %v502
        %v507 = vtanh.pop %v505
        %v508 = vtanh.pop %v506
        %v509 = vxor.u32 %v505, 2147483648
        %v510 = vxor.u32 %v506, 2147483648
        %v511 = vmul.f32 %v509, 1.442695
        %v512 = vpow.pop %v511
        %v513 = vmul.f32 %v510, 1.442695
        %v514 = vpow.pop %v513
        %v515 = vadd.f32 %v512, 1.0
        %v516 = vadd.f32 %v514, 1.0
        %v517 = vrcp.pop %v515
        %v518 = vmul.f32 1.0, %v517
        %v519 = vrcp.pop %v516
        %v520 = vmul.f32 1.0, %v519
        %v521 = vsel %vm460, %v507, %v518
        %v522 = vsel %vm460, %v508, %v520
        %v523 = vmul.f32 %v521, 0.0
        %v524 = vmul.f32 %v522, 0.0
        %527 = vrot.lane.b32.xlu0 %v521, 64
        %v528 = vpop.permute.xlu0 %527
        %529 = vrot.lane.b32.xlu0 %v522, 64
        %v530 = vpop.permute.xlu0 %529
        %v533 = vmul.f32 %v521, %v528
        %v534 = vmul.f32 %v522, %v530
        %537 = vrot.lane.b32.xlu0 %v533, 32
        %v538 = vpop.permute.xlu0 %537
        %539 = vrot.lane.b32.xlu0 %v534, 32
        %v540 = vpop.permute.xlu0 %539
        %v543 = vadd.f32 %v523, %v538
        %v544 = vadd.f32 %v524, %v540
        %v545 = vtanh.pop %v543
        %v546 = vtanh.pop %v544
        %549 = vrot.lane.b32.xlu0 %v545, 64
        %v550 = vpop.permute.xlu0 %549
        %551 = vrot.lane.b32.xlu0 %v546, 64
        %v552 = vpop.permute.xlu0 %551
        %v555 = vmul.f32 %v521, %v550
        %v556 = vmul.f32 %v522, %v552
        %v557 = vpack.c.bf16 %v556, %v555
        %559 = vrot.lane.b32.xlu0 %v557, 32
        %v560 = vpop.permute.xlu0 %559
        %v562 = vsel %vm334, %v560, 0
        %564 = vmatprep.subr.bf16.mxu0 0
        %565 = vmatpush1.bf16.msra.mxu0 %v303
        %566 = vmatprep.subr.bf16.mxu0 0
        %567 = vmatpush1.bf16.msra.mxu0 %v304
        %568 = vmatprep.subr.bf16.mxu0 0
        %569 = vmatpush1.bf16.msra.mxu0 0
        %570 = vmatprep.subr.bf16.mxu0 0
        %571 = vmatpush1.bf16.msra.mxu0 0
        %572 = vmatprep.subr.bf16.mxu0 0
        %573 = vmatpush1.bf16.msra.mxu0 0
        %574 = vmatprep.subr.bf16.mxu0 0
        %575 = vmatpush1.bf16.msra.mxu0 0
        %576 = vmatprep.subr.bf16.mxu0 0
        %577 = vmatpush1.bf16.msra.mxu0 0
        %578 = vmatprep.subr.bf16.mxu0 0
        %579 = vmatpush1.bf16.msra.mxu0 0
        %580 = vmatprep.subr.bf16.mxu0 0
        %581 = vmatpush1.bf16.msra.mxu0 0
        %582 = vmatprep.subr.bf16.mxu0 0
        %583 = vmatpush1.bf16.msra.mxu0 0
        %584 = vmatprep.subr.bf16.mxu0 0
        %585 = vmatpush1.bf16.msra.mxu0 0
        %586 = vmatprep.subr.bf16.mxu0 0
        %587 = vmatpush1.bf16.msra.mxu0 0
        %588 = vmatprep.subr.bf16.mxu0 0
        %589 = vmatpush1.bf16.msra.mxu0 0
        %590 = vmatprep.subr.bf16.mxu0 0
        %591 = vmatpush1.bf16.msra.mxu0 0
        %592 = vmatprep.subr.bf16.mxu0 0
        %593 = vmatpush1.bf16.msra.mxu0 0
        %594 = vmatprep.subr.bf16.mxu0 0
        %595 = vmatpush1.bf16.msra.mxu0 0
        %596 = vmatprep.mubr.bf16.mxu0 0
        %597 = vmatmul.mubr.bf16.gmra.mrb[0].mxu0 %v562
        %v598 = vpop.f32.mrb[0].mxu0
        %v599 = vadd.f32 0.0, %v598
        %v600 = vpop.f32.mrb[0].mxu0
        %v601 = vpop.f32.mrb[0].mxu0
        %v602 = vadd.f32 0.0, %v601
        %v603 = vpop.f32.mrb[0].mxu0
        %604 = vdwg.mxu0
        %v605 = vadd.f32 %v402, %v599
        %v606 = vadd.f32 %v405, %v602
        %v607 = vtanh.pop %v605
        %v608 = vtanh.pop %v606
        %v609 = vxor.u32 %v605, 2147483648
        %v610 = vxor.u32 %v606, 2147483648
        %v611 = vmul.f32 %v609, 1.442695
        %v612 = vpow.pop %v611
        %v613 = vmul.f32 %v610, 1.442695
        %v614 = vpow.pop %v613
        %v615 = vadd.f32 %v612, 1.0
        %v616 = vadd.f32 %v614, 1.0
        %v617 = vrcp.pop %v615
        %v618 = vmul.f32 1.0, %v617
        %v619 = vrcp.pop %v616
        %v620 = vmul.f32 1.0, %v619
        %v621 = vsel %vm460, %v607, %v618
        %v622 = vsel %vm460, %v608, %v620
        %v623 = vmul.f32 %v621, %v543
        %v624 = vmul.f32 %v622, %v544
        %627 = vrot.lane.b32.xlu0 %v621, 64
        %v628 = vpop.permute.xlu0 %627
        %629 = vrot.lane.b32.xlu0 %v622, 64
        %v630 = vpop.permute.xlu0 %629
        %v633 = vmul.f32 %v621, %v628
        %v634 = vmul.f32 %v622, %v630
        %637 = vrot.lane.b32.xlu0 %v633, 32
        %v638 = vpop.permute.xlu0 %637
        %639 = vrot.lane.b32.xlu0 %v634, 32
        %v640 = vpop.permute.xlu0 %639
        %v643 = vadd.f32 %v623, %v638
        %v644 = vadd.f32 %v624, %v640
        %v645 = vtanh.pop %v643
        %v646 = vtanh.pop %v644
        %649 = vrot.lane.b32.xlu0 %v645, 64
        %v650 = vpop.permute.xlu0 %649
        %651 = vrot.lane.b32.xlu0 %v646, 64
        %v652 = vpop.permute.xlu0 %651
        %v655 = vmul.f32 %v621, %v650
        %v656 = vmul.f32 %v622, %v652
        %v657 = vpack.c.bf16 %v656, %v655
        %659 = vrot.lane.b32.xlu0 %v657, 32
        %v660 = vpop.permute.xlu0 %659
        %v662 = vsel %vm334, %v660, 0
        %664 = vmatprep.subr.bf16.mxu0 0
        %665 = vmatpush1.bf16.msra.mxu0 %v303
        %666 = vmatprep.subr.bf16.mxu0 0
        %667 = vmatpush1.bf16.msra.mxu0 %v304
        %668 = vmatprep.subr.bf16.mxu0 0
        %669 = vmatpush1.bf16.msra.mxu0 0
        %670 = vmatprep.subr.bf16.mxu0 0
        %671 = vmatpush1.bf16.msra.mxu0 0
        %672 = vmatprep.subr.bf16.mxu0 0
        %673 = vmatpush1.bf16.msra.mxu0 0
        %674 = vmatprep.subr.bf16.mxu0 0
        %675 = vmatpush1.bf16.msra.mxu0 0
        %676 = vmatprep.subr.bf16.mxu0 0
        %677 = vmatpush1.bf16.msra.mxu0 0
        %678 = vmatprep.subr.bf16.mxu0 0
        %679 = vmatpush1.bf16.msra.mxu0 0
        %680 = vmatprep.subr.bf16.mxu0 0
        %681 = vmatpush1.bf16.msra.mxu0 0
        %682 = vmatprep.subr.bf16.mxu0 0
        %683 = vmatpush1.bf16.msra.mxu0 0
        %684 = vmatprep.subr.bf16.mxu0 0
        %685 = vmatpush1.bf16.msra.mxu0 0
        %686 = vmatprep.subr.bf16.mxu0 0
        %687 = vmatpush1.bf16.msra.mxu0 0
        %688 = vmatprep.subr.bf16.mxu0 0
        %689 = vmatpush1.bf16.msra.mxu0 0
        %690 = vmatprep.subr.bf16.mxu0 0
        %691 = vmatpush1.bf16.msra.mxu0 0
        %692 = vmatprep.subr.bf16.mxu0 0
        %693 = vmatpush1.bf16.msra.mxu0 0
        %694 = vmatprep.subr.bf16.mxu0 0
        %695 = vmatpush1.bf16.msra.mxu0 0
        %696 = vmatprep.mubr.bf16.mxu0 0
        %697 = vmatmul.mubr.bf16.gmra.mrb[0].mxu0 %v662
        %v698 = vpop.f32.mrb[0].mxu0
        %v699 = vadd.f32 0.0, %v698
        %v700 = vpop.f32.mrb[0].mxu0
        %v701 = vpop.f32.mrb[0].mxu0
        %v702 = vadd.f32 0.0, %v701
        %v703 = vpop.f32.mrb[0].mxu0
        %704 = vdwg.mxu0
        %v705 = vadd.f32 %v410, %v699
        %v706 = vadd.f32 %v413, %v702
        %v707 = vtanh.pop %v705
        %v708 = vtanh.pop %v706
        %v709 = vxor.u32 %v705, 2147483648
        %v710 = vxor.u32 %v706, 2147483648
        %v711 = vmul.f32 %v709, 1.442695
        %v712 = vpow.pop %v711
        %v713 = vmul.f32 %v710, 1.442695
        %v714 = vpow.pop %v713
        %v715 = vadd.f32 %v712, 1.0
        %v716 = vadd.f32 %v714, 1.0
        %v717 = vrcp.pop %v715
        %v718 = vmul.f32 1.0, %v717
        %v719 = vrcp.pop %v716
        %v720 = vmul.f32 1.0, %v719
        %v721 = vsel %vm460, %v707, %v718
        %v722 = vsel %vm460, %v708, %v720
        %v723 = vmul.f32 %v721, %v643
        %v724 = vmul.f32 %v722, %v644
        %727 = vrot.lane.b32.xlu0 %v721, 64
        %v728 = vpop.permute.xlu0 %727
        %729 = vrot.lane.b32.xlu0 %v722, 64
        %v730 = vpop.permute.xlu0 %729
        %v733 = vmul.f32 %v721, %v728
        %v734 = vmul.f32 %v722, %v730
        %737 = vrot.lane.b32.xlu0 %v733, 32
        %v738 = vpop.permute.xlu0 %737
        %739 = vrot.lane.b32.xlu0 %v734, 32
        %v740 = vpop.permute.xlu0 %739
        %v743 = vadd.f32 %v723, %v738
        %v744 = vadd.f32 %v724, %v740
        %v745 = vtanh.pop %v743
        %v746 = vtanh.pop %v744
        %749 = vrot.lane.b32.xlu0 %v745, 64
        %v750 = vpop.permute.xlu0 %749
        %751 = vrot.lane.b32.xlu0 %v746, 64
        %v752 = vpop.permute.xlu0 %751
        %v755 = vmul.f32 %v721, %v750
        %v756 = vmul.f32 %v722, %v752
        %v757 = vpack.c.bf16 %v756, %v755
        %759 = vrot.lane.b32.xlu0 %v757, 32
        %v760 = vpop.permute.xlu0 %759
        %v762 = vsel %vm334, %v760, 0
        %764 = vmatprep.subr.bf16.mxu0 0
        %765 = vmatpush1.bf16.msra.mxu0 %v303
        %766 = vmatprep.subr.bf16.mxu0 0
        %767 = vmatpush1.bf16.msra.mxu0 %v304
        %768 = vmatprep.subr.bf16.mxu0 0
        %769 = vmatpush1.bf16.msra.mxu0 0
        %770 = vmatprep.subr.bf16.mxu0 0
        %771 = vmatpush1.bf16.msra.mxu0 0
        %772 = vmatprep.subr.bf16.mxu0 0
        %773 = vmatpush1.bf16.msra.mxu0 0
        %774 = vmatprep.subr.bf16.mxu0 0
        %775 = vmatpush1.bf16.msra.mxu0 0
        %776 = vmatprep.subr.bf16.mxu0 0
        %777 = vmatpush1.bf16.msra.mxu0 0
        %778 = vmatprep.subr.bf16.mxu0 0
        %779 = vmatpush1.bf16.msra.mxu0 0
        %780 = vmatprep.subr.bf16.mxu0 0
        %781 = vmatpush1.bf16.msra.mxu0 0
        %782 = vmatprep.subr.bf16.mxu0 0
        %783 = vmatpush1.bf16.msra.mxu0 0
        %784 = vmatprep.subr.bf16.mxu0 0
        %785 = vmatpush1.bf16.msra.mxu0 0
        %786 = vmatprep.subr.bf16.mxu0 0
        %787 = vmatpush1.bf16.msra.mxu0 0
        %788 = vmatprep.subr.bf16.mxu0 0
        %789 = vmatpush1.bf16.msra.mxu0 0
        %790 = vmatprep.subr.bf16.mxu0 0
        %791 = vmatpush1.bf16.msra.mxu0 0
        %792 = vmatprep.subr.bf16.mxu0 0
        %793 = vmatpush1.bf16.msra.mxu0 0
        %794 = vmatprep.subr.bf16.mxu0 0
        %795 = vmatpush1.bf16.msra.mxu0 0
        %796 = vmatprep.mubr.bf16.mxu0 0
        %797 = vmatmul.mubr.bf16.gmra.mrb[0].mxu0 %v762
        %v798 = vpop.f32.mrb[0].mxu0
        %v799 = vadd.f32 0.0, %v798
        %v800 = vpop.f32.mrb[0].mxu0
        %v801 = vpop.f32.mrb[0].mxu0
        %v802 = vadd.f32 0.0, %v801
        %v803 = vpop.f32.mrb[0].mxu0
        %804 = vdwg.mxu0
        %v805 = vadd.f32 %v418, %v799
        %v806 = vadd.f32 %v421, %v802
        %v807 = vtanh.pop %v805
        %v808 = vtanh.pop %v806
        %v809 = vxor.u32 %v805, 2147483648
        %v810 = vxor.u32 %v806, 2147483648
        %v811 = vmul.f32 %v809, 1.442695
        %v812 = vpow.pop %v811
        %v813 = vmul.f32 %v810, 1.442695
        %v814 = vpow.pop %v813
        %v815 = vadd.f32 %v812, 1.0
        %v816 = vadd.f32 %v814, 1.0
        %v817 = vrcp.pop %v815
        %v818 = vmul.f32 1.0, %v817
        %v819 = vrcp.pop %v816
        %v820 = vmul.f32 1.0, %v819
        %v821 = vsel %vm460, %v807, %v818
        %v822 = vsel %vm460, %v808, %v820
        %v823 = vmul.f32 %v821, %v743
        %v824 = vmul.f32 %v822, %v744
        %827 = vrot.lane.b32.xlu0 %v821, 64
        %v828 = vpop.permute.xlu0 %827
        %829 = vrot.lane.b32.xlu0 %v822, 64
        %v830 = vpop.permute.xlu0 %829
        %v833 = vmul.f32 %v821, %v828
        %v834 = vmul.f32 %v822, %v830
        %837 = vrot.lane.b32.xlu0 %v833, 32
        %v838 = vpop.permute.xlu0 %837
        %839 = vrot.lane.b32.xlu0 %v834, 32
        %v840 = vpop.permute.xlu0 %839
        %v843 = vadd.f32 %v823, %v838
        %v844 = vadd.f32 %v824, %v840
        %v845 = vtanh.pop %v843
        %v846 = vtanh.pop %v844
        %849 = vrot.lane.b32.xlu0 %v845, 64
        %v850 = vpop.permute.xlu0 %849
        %851 = vrot.lane.b32.xlu0 %v846, 64
        %v852 = vpop.permute.xlu0 %851
        %v855 = vmul.f32 %v821, %v850
        %v856 = vmul.f32 %v822, %v852
        %v857 = vpack.c.bf16 %v856, %v855
        %859 = vrot.lane.b32.xlu0 %v857, 32
        %v860 = vpop.permute.xlu0 %859
        %v862 = vsel %vm334, %v860, 0
        %864 = vmatprep.subr.bf16.mxu0 0
        %865 = vmatpush1.bf16.msra.mxu0 %v303
        %866 = vmatprep.subr.bf16.mxu0 0
        %867 = vmatpush1.bf16.msra.mxu0 %v304
        %868 = vmatprep.subr.bf16.mxu0 0
        %869 = vmatpush1.bf16.msra.mxu0 0
        %870 = vmatprep.subr.bf16.mxu0 0
        %871 = vmatpush1.bf16.msra.mxu0 0
        %872 = vmatprep.subr.bf16.mxu0 0
        %873 = vmatpush1.bf16.msra.mxu0 0
        %874 = vmatprep.subr.bf16.mxu0 0
        %875 = vmatpush1.bf16.msra.mxu0 0
        %876 = vmatprep.subr.bf16.mxu0 0
        %877 = vmatpush1.bf16.msra.mxu0 0
        %878 = vmatprep.subr.bf16.mxu0 0
        %879 = vmatpush1.bf16.msra.mxu0 0
        %880 = vmatprep.subr.bf16.mxu0 0
        %881 = vmatpush1.bf16.msra.mxu0 0
        %882 = vmatprep.subr.bf16.mxu0 0
        %883 = vmatpush1.bf16.msra.mxu0 0
        %884 = vmatprep.subr.bf16.mxu0 0
        %885 = vmatpush1.bf16.msra.mxu0 0
        %886 = vmatprep.subr.bf16.mxu0 0
        %887 = vmatpush1.bf16.msra.mxu0 0
        %888 = vmatprep.subr.bf16.mxu0 0
        %889 = vmatpush1.bf16.msra.mxu0 0
        %890 = vmatprep.subr.bf16.mxu0 0
        %891 = vmatpush1.bf16.msra.mxu0 0
        %892 = vmatprep.subr.bf16.mxu0 0
        %893 = vmatpush1.bf16.msra.mxu0 0
        %894 = vmatprep.subr.bf16.mxu0 0
        %895 = vmatpush1.bf16.msra.mxu0 0
        %896 = vmatprep.mubr.bf16.mxu0 0
        %897 = vmatmul.mubr.bf16.gmra.mrb[0].mxu0 %v862
        %v898 = vpop.f32.mrb[0].mxu0
        %v899 = vadd.f32 0.0, %v898
        %v900 = vpop.f32.mrb[0].mxu0
        %v901 = vpop.f32.mrb[0].mxu0
        %v902 = vadd.f32 0.0, %v901
        %v903 = vpop.f32.mrb[0].mxu0
        %904 = vdwg.mxu0
        %v905 = vadd.f32 %v426, %v899
        %v906 = vadd.f32 %v429, %v902
        %v907 = vtanh.pop %v905
        %v908 = vtanh.pop %v906
        %v909 = vxor.u32 %v905, 2147483648
        %v910 = vxor.u32 %v906, 2147483648
        %v911 = vmul.f32 %v909, 1.442695
        %v912 = vpow.pop %v911
        %v913 = vmul.f32 %v910, 1.442695
        %v914 = vpow.pop %v913
        %v915 = vadd.f32 %v912, 1.0
        %v916 = vadd.f32 %v914, 1.0
        %v917 = vrcp.pop %v915
        %v918 = vmul.f32 1.0, %v917
        %v919 = vrcp.pop %v916
        %v920 = vmul.f32 1.0, %v919
        %v921 = vsel %vm460, %v907, %v918
        %v922 = vsel %vm460, %v908, %v920
        %v923 = vmul.f32 %v921, %v843
        %v924 = vmul.f32 %v922, %v844
        %927 = vrot.lane.b32.xlu0 %v921, 64
        %v928 = vpop.permute.xlu0 %927
        %929 = vrot.lane.b32.xlu0 %v922, 64
        %v930 = vpop.permute.xlu0 %929
        %v933 = vmul.f32 %v921, %v928
        %v934 = vmul.f32 %v922, %v930
        %937 = vrot.lane.b32.xlu0 %v933, 32
        %v938 = vpop.permute.xlu0 %937
        %939 = vrot.lane.b32.xlu0 %v934, 32
        %v940 = vpop.permute.xlu0 %939
        %v943 = vadd.f32 %v923, %v938
        %v944 = vadd.f32 %v924, %v940
        %v945 = vtanh.pop %v943
        %v946 = vtanh.pop %v944
        %949 = vrot.lane.b32.xlu0 %v945, 64
        %v950 = vpop.permute.xlu0 %949
        %951 = vrot.lane.b32.xlu0 %v946, 64
        %v952 = vpop.permute.xlu0 %951
        %v955 = vmul.f32 %v921, %v950
        %v956 = vmul.f32 %v922, %v952
        %v957 = vpack.c.bf16 %v956, %v955
        %959 = vrot.lane.b32.xlu0 %v957, 32
        %v960 = vpop.permute.xlu0 %959
        %v962 = vsel %vm334, %v960, 0
        %964 = vmatprep.subr.bf16.mxu0 0
        %965 = vmatpush1.bf16.msra.mxu0 %v303
        %966 = vmatprep.subr.bf16.mxu0 0
        %967 = vmatpush1.bf16.msra.mxu0 %v304
        %968 = vmatprep.subr.bf16.mxu0 0
        %969 = vmatpush1.bf16.msra.mxu0 0
        %970 = vmatprep.subr.bf16.mxu0 0
        %971 = vmatpush1.bf16.msra.mxu0 0
        %972 = vmatprep.subr.bf16.mxu0 0
        %973 = vmatpush1.bf16.msra.mxu0 0
        %974 = vmatprep.subr.bf16.mxu0 0
        %975 = vmatpush1.bf16.msra.mxu0 0
        %976 = vmatprep.subr.bf16.mxu0 0
        %977 = vmatpush1.bf16.msra.mxu0 0
        %978 = vmatprep.subr.bf16.mxu0 0
        %979 = vmatpush1.bf16.msra.mxu0 0
        %980 = vmatprep.subr.bf16.mxu0 0
        %981 = vmatpush1.bf16.msra.mxu0 0
        %982 = vmatprep.subr.bf16.mxu0 0
        %983 = vmatpush1.bf16.msra.mxu0 0
        %984 = vmatprep.subr.bf16.mxu0 0
        %985 = vmatpush1.bf16.msra.mxu0 0
        %986 = vmatprep.subr.bf16.mxu0 0
        %987 = vmatpush1.bf16.msra.mxu0 0
        %988 = vmatprep.subr.bf16.mxu0 0
        %989 = vmatpush1.bf16.msra.mxu0 0
        %990 = vmatprep.subr.bf16.mxu0 0
        %991 = vmatpush1.bf16.msra.mxu0 0
        %992 = vmatprep.subr.bf16.mxu0 0
        %993 = vmatpush1.bf16.msra.mxu0 0
        %994 = vmatprep.subr.bf16.mxu0 0
        %995 = vmatpush1.bf16.msra.mxu0 0
        %996 = vmatprep.mubr.bf16.mxu0 0
        %997 = vmatmul.mubr.bf16.gmra.mrb[0].mxu0 %v962
        %v998 = vpop.f32.mrb[0].mxu0
        %v999 = vadd.f32 0.0, %v998
        %v1000 = vpop.f32.mrb[0].mxu0
        %v1001 = vpop.f32.mrb[0].mxu0
        %v1002 = vadd.f32 0.0, %v1001
        %v1003 = vpop.f32.mrb[0].mxu0
        %1004 = vdwg.mxu0
        %v1005 = vadd.f32 %v434, %v999
        %v1006 = vadd.f32 %v437, %v1002
        %v1007 = vtanh.pop %v1005
        %v1008 = vtanh.pop %v1006
        %v1009 = vxor.u32 %v1005, 2147483648
        %v1010 = vxor.u32 %v1006, 2147483648
        %v1011 = vmul.f32 %v1009, 1.442695
        %v1012 = vpow.pop %v1011
        %v1013 = vmul.f32 %v1010, 1.442695
        %v1014 = vpow.pop %v1013
        %v1015 = vadd.f32 %v1012, 1.0
        %v1016 = vadd.f32 %v1014, 1.0
        %v1017 = vrcp.pop %v1015
        %v1018 = vmul.f32 1.0, %v1017
        %v1019 = vrcp.pop %v1016
        %v1020 = vmul.f32 1.0, %v1019
        %v1021 = vsel %vm460, %v1007, %v1018
        %v1022 = vsel %vm460, %v1008, %v1020
        %v1023 = vmul.f32 %v1021, %v943
        %v1024 = vmul.f32 %v1022, %v944
        %1027 = vrot.lane.b32.xlu0 %v1021, 64
        %v1028 = vpop.permute.xlu0 %1027
        %1029 = vrot.lane.b32.xlu0 %v1022, 64
        %v1030 = vpop.permute.xlu0 %1029
        %v1033 = vmul.f32 %v1021, %v1028
        %v1034 = vmul.f32 %v1022, %v1030
        %1037 = vrot.lane.b32.xlu0 %v1033, 32
        %v1038 = vpop.permute.xlu0 %1037
        %1039 = vrot.lane.b32.xlu0 %v1034, 32
        %v1040 = vpop.permute.xlu0 %1039
        %v1043 = vadd.f32 %v1023, %v1038
        %v1044 = vadd.f32 %v1024, %v1040
        %v1045 = vtanh.pop %v1043
        %v1046 = vtanh.pop %v1044
        %1049 = vrot.lane.b32.xlu0 %v1045, 64
        %v1050 = vpop.permute.xlu0 %1049
        %1051 = vrot.lane.b32.xlu0 %v1046, 64
        %v1052 = vpop.permute.xlu0 %1051
        %v1055 = vmul.f32 %v1021, %v1050
        %v1056 = vmul.f32 %v1022, %v1052
        %v1057 = vpack.c.bf16 %v1056, %v1055
        %1059 = vrot.lane.b32.xlu0 %v1057, 32
        %v1060 = vpop.permute.xlu0 %1059
        %v1062 = vsel %vm334, %v1060, 0
        %1064 = vmatprep.subr.bf16.mxu0 0
        %1065 = vmatpush1.bf16.msra.mxu0 %v303
        %1066 = vmatprep.subr.bf16.mxu0 0
        %1067 = vmatpush1.bf16.msra.mxu0 %v304
        %1068 = vmatprep.subr.bf16.mxu0 0
        %1069 = vmatpush1.bf16.msra.mxu0 0
        %1070 = vmatprep.subr.bf16.mxu0 0
        %1071 = vmatpush1.bf16.msra.mxu0 0
        %1072 = vmatprep.subr.bf16.mxu0 0
        %1073 = vmatpush1.bf16.msra.mxu0 0
        %1074 = vmatprep.subr.bf16.mxu0 0
        %1075 = vmatpush1.bf16.msra.mxu0 0
        %1076 = vmatprep.subr.bf16.mxu0 0
        %1077 = vmatpush1.bf16.msra.mxu0 0
        %1078 = vmatprep.subr.bf16.mxu0 0
        %1079 = vmatpush1.bf16.msra.mxu0 0
        %1080 = vmatprep.subr.bf16.mxu0 0
        %1081 = vmatpush1.bf16.msra.mxu0 0
        %1082 = vmatprep.subr.bf16.mxu0 0
        %1083 = vmatpush1.bf16.msra.mxu0 0
        %1084 = vmatprep.subr.bf16.mxu0 0
        %1085 = vmatpush1.bf16.msra.mxu0 0
        %1086 = vmatprep.subr.bf16.mxu0 0
        %1087 = vmatpush1.bf16.msra.mxu0 0
        %1088 = vmatprep.subr.bf16.mxu0 0
        %1089 = vmatpush1.bf16.msra.mxu0 0
        %1090 = vmatprep.subr.bf16.mxu0 0
        %1091 = vmatpush1.bf16.msra.mxu0 0
        %1092 = vmatprep.subr.bf16.mxu0 0
        %1093 = vmatpush1.bf16.msra.mxu0 0
        %1094 = vmatprep.subr.bf16.mxu0 0
        %1095 = vmatpush1.bf16.msra.mxu0 0
        %1096 = vmatprep.mubr.bf16.mxu0 0
        %1097 = vmatmul.mubr.bf16.gmra.mrb[0].mxu0 %v1062
        %v1098 = vpop.f32.mrb[0].mxu0
        %v1099 = vadd.f32 0.0, %v1098
        %v1100 = vpop.f32.mrb[0].mxu0
        %v1101 = vpop.f32.mrb[0].mxu0
        %v1102 = vadd.f32 0.0, %v1101
        %v1103 = vpop.f32.mrb[0].mxu0
        %1104 = vdwg.mxu0
        %v1105 = vadd.f32 %v442, %v1099
        %v1106 = vadd.f32 %v445, %v1102
        %v1107 = vtanh.pop %v1105
        %v1108 = vtanh.pop %v1106
        %v1109 = vxor.u32 %v1105, 2147483648
        %v1110 = vxor.u32 %v1106, 2147483648
        %v1111 = vmul.f32 %v1109, 1.442695
        %v1112 = vpow.pop %v1111
        %v1113 = vmul.f32 %v1110, 1.442695
        %v1114 = vpow.pop %v1113
        %v1115 = vadd.f32 %v1112, 1.0
        %v1116 = vadd.f32 %v1114, 1.0
        %v1117 = vrcp.pop %v1115
        %v1118 = vmul.f32 1.0, %v1117
        %v1119 = vrcp.pop %v1116
        %v1120 = vmul.f32 1.0, %v1119
        %v1121 = vsel %vm460, %v1107, %v1118
        %v1122 = vsel %vm460, %v1108, %v1120
        %v1123 = vmul.f32 %v1121, %v1043
        %v1124 = vmul.f32 %v1122, %v1044
        %1127 = vrot.lane.b32.xlu0 %v1121, 64
        %v1128 = vpop.permute.xlu0 %1127
        %1129 = vrot.lane.b32.xlu0 %v1122, 64
        %v1130 = vpop.permute.xlu0 %1129
        %v1133 = vmul.f32 %v1121, %v1128
        %v1134 = vmul.f32 %v1122, %v1130
        %1137 = vrot.lane.b32.xlu0 %v1133, 32
        %v1138 = vpop.permute.xlu0 %1137
        %1139 = vrot.lane.b32.xlu0 %v1134, 32
        %v1140 = vpop.permute.xlu0 %1139
        %v1143 = vadd.f32 %v1123, %v1138
        %v1144 = vadd.f32 %v1124, %v1140
        %v1145 = vtanh.pop %v1143
        %v1146 = vtanh.pop %v1144
        %1149 = vrot.lane.b32.xlu0 %v1145, 64
        %v1150 = vpop.permute.xlu0 %1149
        %1151 = vrot.lane.b32.xlu0 %v1146, 64
        %v1152 = vpop.permute.xlu0 %1151
        %v1155 = vmul.f32 %v1121, %v1150
        %v1156 = vmul.f32 %v1122, %v1152
        %v1157 = vpack.c.bf16 %v1156, %v1155
        %1159 = vrot.lane.b32.xlu0 %v1157, 32
        %v1160 = vpop.permute.xlu0 %1159
        %v1162 = vsel %vm334, %v1160, 0
        %1164 = vmatprep.subr.bf16.mxu0 0
        %1165 = vmatpush1.bf16.msra.mxu0 %v303
        %1166 = vmatprep.subr.bf16.mxu0 0
        %1167 = vmatpush1.bf16.msra.mxu0 %v304
        %1168 = vmatprep.subr.bf16.mxu0 0
        %1169 = vmatpush1.bf16.msra.mxu0 0
        %1170 = vmatprep.subr.bf16.mxu0 0
        %1171 = vmatpush1.bf16.msra.mxu0 0
        %1172 = vmatprep.subr.bf16.mxu0 0
        %1173 = vmatpush1.bf16.msra.mxu0 0
        %1174 = vmatprep.subr.bf16.mxu0 0
        %1175 = vmatpush1.bf16.msra.mxu0 0
        %1176 = vmatprep.subr.bf16.mxu0 0
        %1177 = vmatpush1.bf16.msra.mxu0 0
        %1178 = vmatprep.subr.bf16.mxu0 0
        %1179 = vmatpush1.bf16.msra.mxu0 0
        %1180 = vmatprep.subr.bf16.mxu0 0
        %1181 = vmatpush1.bf16.msra.mxu0 0
        %1182 = vmatprep.subr.bf16.mxu0 0
        %1183 = vmatpush1.bf16.msra.mxu0 0
        %1184 = vmatprep.subr.bf16.mxu0 0
        %1185 = vmatpush1.bf16.msra.mxu0 0
        %1186 = vmatprep.subr.bf16.mxu0 0
        %1187 = vmatpush1.bf16.msra.mxu0 0
        %1188 = vmatprep.subr.bf16.mxu0 0
        %1189 = vmatpush1.bf16.msra.mxu0 0
        %1190 = vmatprep.subr.bf16.mxu0 0
        %1191 = vmatpush1.bf16.msra.mxu0 0
        %1192 = vmatprep.subr.bf16.mxu0 0
        %1193 = vmatpush1.bf16.msra.mxu0 0
        %1194 = vmatprep.subr.bf16.mxu0 0
        %1195 = vmatpush1.bf16.msra.mxu0 0
        %1196 = vmatprep.mubr.bf16.mxu0 0
        %1197 = vmatmul.mubr.bf16.gmra.mrb[0].mxu0 %v1162
        %v1198 = vpop.f32.mrb[0].mxu0
        %v1199 = vadd.f32 0.0, %v1198
        %v1200 = vpop.f32.mrb[0].mxu0
        %v1201 = vpop.f32.mrb[0].mxu0
        %v1202 = vadd.f32 0.0, %v1201
        %v1203 = vpop.f32.mrb[0].mxu0
        %1204 = vdwg.mxu0
        %v1205 = vadd.f32 %v450, %v1199
        %v1206 = vadd.f32 %v453, %v1202
        %v1207 = vtanh.pop %v1205
        %v1208 = vtanh.pop %v1206
        %v1209 = vxor.u32 %v1205, 2147483648
        %v1210 = vxor.u32 %v1206, 2147483648
        %v1211 = vmul.f32 %v1209, 1.442695
        %v1212 = vpow.pop %v1211
        %v1213 = vmul.f32 %v1210, 1.442695
        %v1214 = vpow.pop %v1213
        %v1215 = vadd.f32 %v1212, 1.0
        %v1216 = vadd.f32 %v1214, 1.0
        %v1217 = vrcp.pop %v1215
        %v1218 = vmul.f32 1.0, %v1217
        %v1219 = vrcp.pop %v1216
        %v1220 = vmul.f32 1.0, %v1219
        %v1221 = vsel %vm460, %v1207, %v1218
        %v1222 = vsel %vm460, %v1208, %v1220
        %v1223 = vmul.f32 %v1221, %v1143
        %v1224 = vmul.f32 %v1222, %v1144
        %1227 = vrot.lane.b32.xlu0 %v1221, 64
        %v1228 = vpop.permute.xlu0 %1227
        %1229 = vrot.lane.b32.xlu0 %v1222, 64
        %v1230 = vpop.permute.xlu0 %1229
        %v1233 = vmul.f32 %v1221, %v1228
        %v1234 = vmul.f32 %v1222, %v1230
        %1237 = vrot.lane.b32.xlu0 %v1233, 32
        %v1238 = vpop.permute.xlu0 %1237
        %1239 = vrot.lane.b32.xlu0 %v1234, 32
        %v1240 = vpop.permute.xlu0 %1239
        %v1243 = vadd.f32 %v1223, %v1238
        %v1244 = vadd.f32 %v1224, %v1240
        %v1245 = vtanh.pop %v1243
        %v1246 = vtanh.pop %v1244
        %1249 = vrot.lane.b32.xlu0 %v1245, 64
        %v1250 = vpop.permute.xlu0 %1249
        %1251 = vrot.lane.b32.xlu0 %v1246, 64
        %v1252 = vpop.permute.xlu0 %1251
        %v1255 = vmul.f32 %v1221, %v1250
        %v1256 = vmul.f32 %v1222, %v1252
        %v1257 = vld [vmem:[%s3] sm:$0xff]
        %v1258 = vld [vmem:[%s3 + $0x8] sm:$0xff]
        %v1259 = vld [vmem:[%s3 + $0x10] sm:$0xff]
        %v1260 = vld [vmem:[%s3 + $0x18] sm:$0xff]
        %v1261 = vld [vmem:[%s3 + $0x20] sm:$0xff]
        %v1262 = vld [vmem:[%s3 + $0x28] sm:$0xff]
        %v1263 = vld [vmem:[%s3 + $0x30] sm:$0xff]
        %v1264 = vld [vmem:[%s3 + $0x38] sm:$0xff]
        %v1265 = vld [vmem:[%s3 + $0x40] sm:$0x1]
        %1267 = vrot.lane.b32.xlu0 %v1256, 32
        %v1268 = vpop.permute.xlu0 %1267
        %v1269 = vsel %vm334, %v1268, 0
        %1271 = vmatprep.subr.mxu0 0.0
        %1272 = vmatpush1.msra.mxu0 %v1261
        %1273 = vmatprep.subr.mxu0 0.0
        %1274 = vmatpush1.msra.mxu0 %v1262
        %1275 = vmatprep.subr.mxu0 0.0
        %1276 = vmatpush1.msra.mxu0 %v1263
        %1277 = vmatprep.subr.mxu0 0.0
        %1278 = vmatpush1.msra.mxu0 %v1264
        %1279 = vmatprep.subr.mxu0 0.0
        %1280 = vmatpush1.msra.mxu0 0.0
        %1281 = vmatprep.subr.mxu0 0.0
        %1282 = vmatpush1.msra.mxu0 0.0
        %1283 = vmatprep.subr.mxu0 0.0
        %1284 = vmatpush1.msra.mxu0 0.0
        %1285 = vmatprep.subr.mxu0 0.0
        %1286 = vmatpush1.msra.mxu0 0.0
        %1287 = vmatprep.subr.mxu0 0.0
        %1288 = vmatpush1.msra.mxu0 0.0
        %1289 = vmatprep.subr.mxu0 0.0
        %1290 = vmatpush1.msra.mxu0 0.0
        %1291 = vmatprep.subr.mxu0 0.0
        %1292 = vmatpush1.msra.mxu0 0.0
        %1293 = vmatprep.subr.mxu0 0.0
        %1294 = vmatpush1.msra.mxu0 0.0
        %1295 = vmatprep.subr.mxu0 0.0
        %1296 = vmatpush1.msra.mxu0 0.0
        %1297 = vmatprep.subr.mxu0 0.0
        %1298 = vmatpush1.msra.mxu0 0.0
        %1299 = vmatprep.subr.mxu0 0.0
        %1300 = vmatpush1.msra.mxu0 0.0
        %1301 = vmatprep.subr.mxu0 0.0
        %1302 = vmatpush1.msra.mxu0 0.0
        %1303 = vmatprep.subr.mxu0 0.0
        %1304 = vmatpush1.msra.mxu0 0.0
        %1305 = vmatprep.subr.mxu0 0.0
        %1306 = vmatpush1.msra.mxu0 0.0
        %1307 = vmatprep.subr.mxu0 0.0
        %1308 = vmatpush1.msra.mxu0 0.0
        %1309 = vmatprep.subr.mxu0 0.0
        %1310 = vmatpush1.msra.mxu0 0.0
        %1311 = vmatprep.subr.mxu0 0.0
        %1312 = vmatpush1.msra.mxu0 0.0
        %1313 = vmatprep.subr.mxu0 0.0
        %1314 = vmatpush1.msra.mxu0 0.0
        %1315 = vmatprep.subr.mxu0 0.0
        %1316 = vmatpush1.msra.mxu0 0.0
        %1317 = vmatprep.subr.mxu0 0.0
        %1318 = vmatpush1.msra.mxu0 0.0
        %1319 = vmatprep.subr.mxu0 0.0
        %1320 = vmatpush1.msra.mxu0 0.0
        %1321 = vmatprep.subr.mxu0 0.0
        %1322 = vmatpush1.msra.mxu0 0.0
        %1323 = vmatprep.subr.mxu0 0.0
        %1324 = vmatpush1.msra.mxu0 0.0
        %1325 = vmatprep.subr.mxu0 0.0
        %1326 = vmatpush1.msra.mxu0 0.0
        %1327 = vmatprep.subr.mxu0 0.0
        %1328 = vmatpush1.msra.mxu0 0.0
        %1329 = vmatprep.subr.mxu0 0.0
        %1330 = vmatpush1.msra.mxu0 0.0
        %1331 = vmatprep.subr.mxu0 0.0
        %1332 = vmatpush1.msra.mxu0 0.0
        %1333 = vmatprep.subr.mxu0 0.0
        %1334 = vmatpush1.msra.mxu0 0.0
        %1335 = vmatprep.mubr.f32.mxu0 0.0
        %1336 = vmatmul.mubr.f32.gmra.mrb[0].mxu0 %v1269
        %v1337 = vpop.f32.mrb[0].mxu0
        %v1338 = vadd.f32 0.0, %v1337
        %v1339 = vpop.f32.mrb[0].mxu0
        %1340 = vdwg.mxu0
        %1342 = vrot.lane.b32.xlu0 %v1255, 32
        %v1343 = vpop.permute.xlu0 %1342
        %v1344 = vsel %vm334, %v1343, 0
        %1346 = vmatprep.subr.mxu0 0.0
        %1347 = vmatpush1.msra.mxu0 %v1257
        %1348 = vmatprep.subr.mxu0 0.0
        %1349 = vmatpush1.msra.mxu0 %v1258
        %1350 = vmatprep.subr.mxu0 0.0
        %1351 = vmatpush1.msra.mxu0 %v1259
        %1352 = vmatprep.subr.mxu0 0.0
        %1353 = vmatpush1.msra.mxu0 %v1260
        %1354 = vmatprep.subr.mxu0 0.0
        %1355 = vmatpush1.msra.mxu0 0.0
        %1356 = vmatprep.subr.mxu0 0.0
        %1357 = vmatpush1.msra.mxu0 0.0
        %1358 = vmatprep.subr.mxu0 0.0
        %1359 = vmatpush1.msra.mxu0 0.0
        %1360 = vmatprep.subr.mxu0 0.0
        %1361 = vmatpush1.msra.mxu0 0.0
        %1362 = vmatprep.subr.mxu0 0.0
        %1363 = vmatpush1.msra.mxu0 0.0
        %1364 = vmatprep.subr.mxu0 0.0
        %1365 = vmatpush1.msra.mxu0 0.0
        %1366 = vmatprep.subr.mxu0 0.0
        %1367 = vmatpush1.msra.mxu0 0.0
        %1368 = vmatprep.subr.mxu0 0.0
        %1369 = vmatpush1.msra.mxu0 0.0
        %1370 = vmatprep.subr.mxu0 0.0
        %1371 = vmatpush1.msra.mxu0 0.0
        %1372 = vmatprep.subr.mxu0 0.0
        %1373 = vmatpush1.msra.mxu0 0.0
        %1374 = vmatprep.subr.mxu0 0.0
        %1375 = vmatpush1.msra.mxu0 0.0
        %1376 = vmatprep.subr.mxu0 0.0
        %1377 = vmatpush1.msra.mxu0 0.0
        %1378 = vmatprep.subr.mxu0 0.0
        %1379 = vmatpush1.msra.mxu0 0.0
        %1380 = vmatprep.subr.mxu0 0.0
        %1381 = vmatpush1.msra.mxu0 0.0
        %1382 = vmatprep.subr.mxu0 0.0
        %1383 = vmatpush1.msra.mxu0 0.0
        %1384 = vmatprep.subr.mxu0 0.0
        %1385 = vmatpush1.msra.mxu0 0.0
        %1386 = vmatprep.subr.mxu0 0.0
        %1387 = vmatpush1.msra.mxu0 0.0
        %1388 = vmatprep.subr.mxu0 0.0
        %1389 = vmatpush1.msra.mxu0 0.0
        %1390 = vmatprep.subr.mxu0 0.0
        %1391 = vmatpush1.msra.mxu0 0.0
        %1392 = vmatprep.subr.mxu0 0.0
        %1393 = vmatpush1.msra.mxu0 0.0
        %1394 = vmatprep.subr.mxu0 0.0
        %1395 = vmatpush1.msra.mxu0 0.0
        %1396 = vmatprep.subr.mxu0 0.0
        %1397 = vmatpush1.msra.mxu0 0.0
        %1398 = vmatprep.subr.mxu0 0.0
        %1399 = vmatpush1.msra.mxu0 0.0
        %1400 = vmatprep.subr.mxu0 0.0
        %1401 = vmatpush1.msra.mxu0 0.0
        %1402 = vmatprep.subr.mxu0 0.0
        %1403 = vmatpush1.msra.mxu0 0.0
        %1404 = vmatprep.subr.mxu0 0.0
        %1405 = vmatpush1.msra.mxu0 0.0
        %1406 = vmatprep.subr.mxu0 0.0
        %1407 = vmatpush1.msra.mxu0 0.0
        %1408 = vmatprep.subr.mxu0 0.0
        %1409 = vmatpush1.msra.mxu0 0.0
        %1410 = vmatprep.mubr.f32.mxu0 0.0
        %1411 = vmatmul.mubr.f32.gmra.mrb[0].mxu0 %v1344
        %v1412 = vpop.f32.mrb[0].mxu0
        %v1413 = vadd.f32 %v1338, %v1412
        %v1414 = vpop.f32.mrb[0].mxu0
        %1415 = vdwg.mxu0
        %v1416 = vlaneseq
        %v1417 = vshrl.u32 %v1416, 7
        %v1418 = vsub.s32 0, %v1417
        %v1419 = vrot.slane %v1265, %v1418
        %v1420 = vadd.f32 %v1413, %v1419
        %vm1421 = vcmask 31744
        %1422 = vst.msk [vmem:[%s287] sm:$0xff] %vm1421, %v1420
        %v1423 = vsel %vm1421, %v1420, -inf
        %1424 = vmax.xlane.f32.xlu0 %v1423
        %v1425 = vpop.xlane.xlu0 %1424
        %vm1426 = vcmp.eq.f32.partialorder %v1420, %v1425
        %v1427 = vsel %vm1426, %v457, 2147483647
        %v1428 = vsel %vm1421, %v1427, 2147483647
        %v1429 = vand.u32 %v1428, 65535
        %v1430 = vshra.s32 %v1428, 16
        %v1431 = vcvt.s32.f32 %v1429
        %v1432 = vcvt.s32.f32 %v1430
        %1433 = vmin.xlane.f32.xlu0 %v1432
        %v1434 = vpop.xlane.xlu0 %1433
        %vm1435 = vcmp.eq.f32.partialorder %v1432, %v1434
        %v1436 = vsel %vm1435, %v1431, inf
        %1437 = vmin.xlane.f32.xlu0 %v1436
        %v1438 = vpop.xlane.xlu0 %1437
        %v1439 = vcvt.f32.s32 %v1438
        %v1440 = vcvt.f32.s32 %v1434
        %v1441 = vshll.u32 %v1440, 16
        %v1442 = vadd.s32 %v1441, %v1439
        %vm1443 = vcmask 7168
        %1444 = vst.msk [vmem:[%s291] sm:$0xff] %vm1443, %v1442
        %p1445 = scmp.lt.s32.totalorder %s23, 3
        %s1446 = scalar_select %p1445, %s23, 3
        %s1447 = smul.addr %s1446, 8
        %s1448 = scalar_lea.vmem %s4, %s1447
        %p1449 = scmp.lt.s32.totalorder %s23, 3
        %s1450 = scalar_select %p1449, %s23, 3
        %s1451 = smul.addr %s1450, 8
        %s1452 = scalar_lea.vmem %s5, %s1451
        // Predicated region
        $region45: #{tpu_custom_call.1} parent=35 // pred_check
          %p1453 = pneg %p135
        $region46: #{tpu_custom_call.1} parent=35 // pred_check_branch
          %1455 = sbr.rel (%p1453) target = $region48
        $region47: #{tpu_custom_call.1} parent=35 // pred_region
          _
        $region48: #{tpu_custom_call.1} parent=35 // pred_fallthru
          _
        // Predicated region
        $region49: #{tpu_custom_call.1} parent=35 // pred_check
          %p1456 = pneg %p161
        $region50: #{tpu_custom_call.1} parent=35 // pred_check_branch
          %1458 = sbr.rel (%p1456) target = $region52
        $region51: #{tpu_custom_call.1} parent=35 // pred_region
          _
        $region52: #{tpu_custom_call.1} parent=35 // pred_fallthru
          _
      $region36: #{tpu_custom_call.1} parent=5 // pred_fallthru
        _
      %p1459 = scmp.le.s32.totalorder 2, %s18
      // Predicated region
      $region53: #{tpu_custom_call.1} parent=5 // pred_check
        %p1460 = pneg %p1459
      $region54: #{tpu_custom_call.1} parent=5 // pred_check_branch
        %1462 = sbr.rel (%p1460) target = $region56
      $region55: #{tpu_custom_call.1} parent=5 // pred_region
        %s1463 = ssub.s32 %s18, 2
        // Predicated region
        $region57: #{tpu_custom_call.1} parent=55 // pred_check
          %p1464 = pneg %p141
        $region58: #{tpu_custom_call.1} parent=55 // pred_check_branch
          %1466 = sbr.rel (%p1464) target = $region60
        $region59: #{tpu_custom_call.1} parent=55 // pred_region
          %p1467 = scmp.lt.s32.totalorder %s24, 3
          %s1468 = scalar_select %p1467, %s24, 3
          %s1469 = smul.addr %s1468, 8
          %s1470 = scalar_lea.vmem %s4, %s1469
        $region60: #{tpu_custom_call.1} parent=55 // pred_fallthru
          _
        // Predicated region
        $region61: #{tpu_custom_call.1} parent=55 // pred_check
          %p1471 = pneg %p167
        $region62: #{tpu_custom_call.1} parent=55 // pred_check_branch
          %1473 = sbr.rel (%p1471) target = $region64
        $region63: #{tpu_custom_call.1} parent=55 // pred_region
          %p1474 = scmp.lt.s32.totalorder %s24, 3
          %s1475 = scalar_select %p1474, %s24, 3
          %s1476 = smul.addr %s1475, 8
          %s1477 = scalar_lea.vmem %s5, %s1476
        $region64: #{tpu_custom_call.1} parent=55 // pred_fallthru
          _
      $region56: #{tpu_custom_call.1} parent=5 // pred_fallthru
        _
    $region6: #{tpu_custom_call.1} parent=1 // loop_footer
      %s22 = sadd.s32 1, %s18
    $region7: #{tpu_custom_call.1} parent=1 // loop_footer_branch
      %17 = sbr.rel target = $region3
    $region8: #{tpu_custom_call.1} parent=1 // loop_exit
      _
    %1478 = vsyncpa [#allocation3], 1
    %s1479 = scalar_lea.sflag [#allocation3], 1
    %1480 = vsyncpa %s1479, 1
    %1481 = vsyncpa [#allocation5], 1
    %s1482 = scalar_lea.sflag [#allocation5], 1
    %1483 = vsyncpa %s1482, 1

</llo_original>
